<compile_context>
chip_gen: v6e
topology: v6e:2x2x1
jax: 0.10.0
libtpu: 0.0.40
codegen_flags: <defaults>
</compile_context>

<pallas_src>
import jax
import jax.numpy as jnp
from jax import lax
from jax.experimental import pallas as pl
from jax.experimental.pallas import tpu as pltpu


def _make_unpacked_kernel(bj_t):
    """Output block (bj_t, tt, N) in the natural (lane-sparse if N<128) layout."""

    def kernel(x_ref, w_ref, b_ref, o_ref):
        w = w_ref[...]
        b = b_ref[...].astype(jnp.float32)               # (1, N)
        for g in range(bj_t):                            # static unroll (bj_t <= 32)
            # (F, tt) x (F, N), contracting F (lhs dim 0): transposed-LHS MXU
            # matmul straight from the native [.., F, T] layout.
            acc = lax.dot_general(
                x_ref[g], w,
                dimension_numbers=(((0,), (0,)), ((), ())),
                preferred_element_type=jnp.float32)       # (tt, N)
            o_ref[g] = (acc + b).astype(o_ref.dtype)

    return kernel


def _make_packed_kernel(bj_t, pack):
    """Lane-dense output block (bj_t, tt//pack, pack*N); pack*N is a multiple of 128."""

    def kernel(x_ref, w_ref, b_ref, o_ref, acc_scr):
        w = w_ref[...]
        b = b_ref[...].astype(jnp.float32)               # (1, N)
        n = w.shape[1]
        q = o_ref.shape[1]                               # tt // pack
        for g in range(bj_t):                            # static unroll (bj_t <= 32)
            acc = lax.dot_general(
                x_ref[g], w,
                dimension_numbers=(((0,), (0,)), ((), ())),
                preferred_element_type=jnp.float32)       # (tt, N)
            acc_scr[...] = acc + b
            # Relayout (tt, N) -> (tt//pack, pack*N): dense row r holds times
            # [pack*r, pack*r + pack).  Sublane-strided VMEM reads; pure
            # VMEM/VPU work that hides under the HBM DMAs in this mem-bound op.
            for j in range(pack):
                o_ref[g, :, j * n:(j + 1) * n] = (
                    acc_scr[pl.ds(j, q, stride=pack), :].astype(o_ref.dtype))

    return kernel


def _pick_tiles(BJ, F, T, N, itemsize):
    """Pick (bj_tile, t_tile, lane_pack) that divide exactly and give ~MiB-scale steps."""
    # T tile: a multiple of 128 that divides T exactly, else the whole T
    # (the BJ tile then keeps per-step data large — no tiny-step regime).
    tt = T
    if T % 128 == 0:
        for cand in (1024, 512, 384, 256, 128):
            if T % cand == 0:
                tt = cand
                break
    # Lane packing factor for the output: pack consecutive time steps into one
    # 128-lane row when N < 128 (e.g. N=32 -> pack=4 -> 128 lanes).
    pack = 1
    if N < 128 and 128 % N == 0:
        p = 128 // N
        if T % p == 0 and tt % p == 0:
            pack = p
    # BJ tile: target ~2 MiB of activations+outputs per grid step (amortizes
    # the ~600-cycle per-step overhead on v5e/v6e/v7x yet double-buffers well
    # inside every scoped-VMEM default); cap the static unroll at 32 and keep
    # it an exact divisor of BJ (no ragged blocks).
    per_bj = (F * tt + tt * N) * itemsize
    bj_t = int(max(1, min(BJ, 32, (2 << 20) // max(per_bj, 1))))
    while BJ % bj_t:
        bj_t -= 1
    # v7x megacore: if both grid axes would collapse to 1, split BJ so at
    # least 2 parallel blocks exist (neutral on single-TC v5e/v6e).
    if BJ // bj_t < 2 and T // tt < 2 and BJ >= 2:
        bj_t = max(1, bj_t // 2)
        while BJ % bj_t:
            bj_t -= 1
    return bj_t, tt, pack


def input_process(x, weight, bias, *, bj_tile=None, t_tile=None, lane_pack=None):
    """x: [B, J, F, T]; weight: [F, N]; bias: [N]  ->  [B, J, T, N]."""
    B, J, F, T = x.shape
    N = weight.shape[1]
    BJ = B * J

    # Free reshapes (merge leading dims only; no transpose, no data movement).
    x3 = x.reshape(BJ, F, T)
    b2 = bias.reshape(1, N)

    bj_t, tt, pack = _pick_tiles(BJ, F, T, N, jnp.dtype(x.dtype).itemsize)
    if bj_tile is not None:
        bj_t = bj_tile
    if t_tile is not None:
        tt = t_tile
    if lane_pack is not None:
        pack = lane_pack

    grid = (pl.cdiv(BJ, bj_t), pl.cdiv(T, tt))
    cparams = pltpu.CompilerParams(
        dimension_semantics=("parallel", "parallel"))
    cost = pl.CostEstimate(
        flops=2 * BJ * T * F * N,
        transcendentals=0,
        bytes_accessed=int(x.size * x.dtype.itemsize
                           + BJ * T * N * x.dtype.itemsize
                           + weight.size * weight.dtype.itemsize
                           + bias.size * bias.dtype.itemsize))

    in_specs = [
        # Activation tile in native [.., F, T] layout; pipelined over the grid.
        pl.BlockSpec((bj_t, F, tt), lambda g, t: (g, 0, t)),
        # Weight & bias: constant index_map -> fetched once, VMEM-resident.
        pl.BlockSpec((F, N), lambda g, t: (0, 0)),
        pl.BlockSpec((1, N), lambda g, t: (0, 0)),
    ]

    if pack > 1:
        try:
            out4 = pl.pallas_call(
                _make_packed_kernel(bj_t, pack),
                out_shape=jax.ShapeDtypeStruct((BJ, T // pack, pack * N), x.dtype),
                grid=grid,
                in_specs=in_specs,
                out_specs=pl.BlockSpec((bj_t, tt // pack, pack * N),
                                       lambda g, t: (g, t, 0)),
                scratch_shapes=[pltpu.VMEM((tt, N), jnp.float32)],
                compiler_params=cparams,
                cost_estimate=cost,
            )(x3, weight, b2)
            # (BJ, T//pack, pack*N) is a row-major reinterpretation of
            # (B, J, T, N): this reshape is free (no transpose).
            return out4.reshape(B, J, T, N)
        except Exception:
            # TODO(synk): if this Mosaic build rejects the sublane-strided
            # VMEM reads / lane-offset stores used for the dense relayout,
            # fall back to the lane-sparse (but correct) output layout.
            # The fallback only triggers when called eagerly (not under jit).
            pass

    out = pl.pallas_call(
        _make_unpacked_kernel(bj_t),
        out_shape=jax.ShapeDtypeStruct((BJ, T, N), x.dtype),
        grid=grid,
        in_specs=in_specs,
        out_specs=pl.BlockSpec((bj_t, tt, N), lambda g, t: (g, t, 0)),
        compiler_params=cparams,
        cost_estimate=cost,
    )(x3, weight, b2)
    return out.reshape(B, J, T, N)


if __name__ == "__main__":
    # Small, deterministic example shapes consistent with the module:
    #   batch B=2, joints J=4, input_feats F=16, frames T=16, latent_dim N=32
    B, J, F, T = 2, 4, 16, 16
    latent_dim = 32

    key = jax.random.PRNGKey(0)
    kx, kw, kb = jax.random.split(key, 3)

    x = jax.random.normal(kx, (B, J, F, T), dtype=jnp.float32)

    # PyTorch nn.Linear stores weight as [latent_dim, F]; we keep it
    # pre-transposed ([F, latent_dim]) so the MXU consumes it directly.
    bound = 1.0 / (F ** 0.5)
    weight = jax.random.uniform(kw, (F, latent_dim), dtype=jnp.float32,
                                minval=-bound, maxval=bound)
    bias = jax.random.uniform(kb, (latent_dim,), dtype=jnp.float32,
                              minval=-bound, maxval=bound)

    out = input_process(x, weight, bias)
    out = jax.block_until_ready(out)

    # Reference: the PyTorch forward in pure JAX.
    ref = jnp.transpose(x, (0, 1, 3, 2)) @ weight + bias
    assert out.shape == (B, J, T, latent_dim), out.shape
    assert jnp.allclose(out, ref, atol=1e-5, rtol=1e-5), \
        float(jnp.max(jnp.abs(out - ref)))

    print("KERNEL_OK")
</pallas_src>

<mosaic_0001>
module attributes {stable_mosaic.version = 11 : i64} {
  func.func @kernel(%arg0: i32, %arg1: i32, %arg2: memref<4x16x16xf32, #tpu.memory_space<vmem>>, %arg3: memref<16x32xf32, #tpu.memory_space<vmem>>, %arg4: memref<1x32xf32, #tpu.memory_space<vmem>>, %arg5: memref<4x4x128xf32, #tpu.memory_space<vmem>>, %arg6: memref<16x32xf32, #tpu.memory_space<vmem>>) attributes {dimension_semantics = [#tpu.dimension_semantics<parallel>, #tpu.dimension_semantics<parallel>], iteration_bounds = array<i64: 2, 1>, scalar_prefetch = 0 : i64, scratch_operands = 1 : i64, tpu.core_type = #tpu.core_type<tc>, window_params = [{transform_indices = @transform_0, window_bounds = array<i64: 4, 16, 16>}, {pipeline_mode = #tpu.pipeline_mode<synchronous>, transform_indices = @transform_1, window_bounds = array<i64: 16, 32>}, {pipeline_mode = #tpu.pipeline_mode<synchronous>, transform_indices = @transform_2, window_bounds = array<i64: 1, 32>}, {transform_indices = @transform_3, window_bounds = array<i64: 4, 4, 128>}]} {
    %c0 = arith.constant 0 : index
    %c0_0 = arith.constant 0 : index
    %0 = vector.load %arg3[%c0, %c0_0] : memref<16x32xf32, #tpu.memory_space<vmem>>, vector<16x32xf32>
    %c0_1 = arith.constant 0 : index
    %c0_2 = arith.constant 0 : index
    %1 = vector.load %arg4[%c0_1, %c0_2] : memref<1x32xf32, #tpu.memory_space<vmem>>, vector<1x32xf32>
    %c0_3 = arith.constant 0 : index
    %c0_4 = arith.constant 0 : index
    %c0_5 = arith.constant 0 : index
    %2 = vector.load %arg2[%c0_3, %c0_4, %c0_5] : memref<4x16x16xf32, #tpu.memory_space<vmem>>, vector<1x16x16xf32>
    %3 = vector.shape_cast %2 : vector<1x16x16xf32> to vector<16x16xf32>
    %cst = arith.constant dense<0.000000e+00> : vector<16x32xf32>
    %4 = tpu.matmul %3, %0, %cst {dimension_numbers = #tpu.dot_dimension_numbers<[0], [0], [1], [1], [0, 1, 1, 1], [], []>} : vector<16x16xf32>, vector<16x32xf32>, vector<16x32xf32> -> vector<16x32xf32>
    %5 = vector.broadcast %1 : vector<1x32xf32> to vector<16x32xf32>
    %6 = arith.addf %4, %5 : vector<16x32xf32>
    %c0_6 = arith.constant 0 : index
    %c0_7 = arith.constant 0 : index
    %7 = vector.load %arg6[%c0_6, %c0_7] : memref<16x32xf32, #tpu.memory_space<vmem>>, vector<16x32xf32>
    tpu.vector_store %arg6[%c0_6, %c0_7], %6 {strides = array<i32>} : memref<16x32xf32, #tpu.memory_space<vmem>>, vector<16x32xf32>,
    %c0_8 = arith.constant 0 : index
    %c0_9 = arith.constant 0 : index
    %8 = tpu.strided_load %arg6[%c0_8, %c0_9] {strides = array<i32: 4, 1>} : memref<16x32xf32, #tpu.memory_space<vmem>>, vector<4x32xf32>
    %c0_10 = arith.constant 0 : index
    %c0_11 = arith.constant 0 : index
    %c0_12 = arith.constant 0 : index
    %9 = vector.load %arg5[%c0_10, %c0_11, %c0_12] : memref<4x4x128xf32, #tpu.memory_space<vmem>>, vector<1x4x32xf32>
    %10 = vector.shape_cast %9 : vector<1x4x32xf32> to vector<4x32xf32>
    %11 = vector.shape_cast %8 : vector<4x32xf32> to vector<1x4x32xf32>
    tpu.vector_store %arg5[%c0_10, %c0_11, %c0_12], %11 {strides = array<i32>} : memref<4x4x128xf32, #tpu.memory_space<vmem>>, vector<1x4x32xf32>,
    %c1 = arith.constant 1 : index
    %c0_13 = arith.constant 0 : index
    %12 = tpu.strided_load %arg6[%c1, %c0_13] {strides = array<i32: 4, 1>} : memref<16x32xf32, #tpu.memory_space<vmem>>, vector<4x32xf32>
    %c0_14 = arith.constant 0 : index
    %c0_15 = arith.constant 0 : index
    %c32 = arith.constant 32 : index
    %13 = vector.load %arg5[%c0_14, %c0_15, %c32] : memref<4x4x128xf32, #tpu.memory_space<vmem>>, vector<1x4x32xf32>
    %14 = vector.shape_cast %13 : vector<1x4x32xf32> to vector<4x32xf32>
    %15 = vector.shape_cast %12 : vector<4x32xf32> to vector<1x4x32xf32>
    tpu.vector_store %arg5[%c0_14, %c0_15, %c32], %15 {strides = array<i32>} : memref<4x4x128xf32, #tpu.memory_space<vmem>>, vector<1x4x32xf32>,
    %c2 = arith.constant 2 : index
    %c0_16 = arith.constant 0 : index
    %16 = tpu.strided_load %arg6[%c2, %c0_16] {strides = array<i32: 4, 1>} : memref<16x32xf32, #tpu.memory_space<vmem>>, vector<4x32xf32>
    %c0_17 = arith.constant 0 : index
    %c0_18 = arith.constant 0 : index
    %c64 = arith.constant 64 : index
    %17 = vector.load %arg5[%c0_17, %c0_18, %c64] : memref<4x4x128xf32, #tpu.memory_space<vmem>>, vector<1x4x32xf32>
    %18 = vector.shape_cast %17 : vector<1x4x32xf32> to vector<4x32xf32>
    %19 = vector.shape_cast %16 : vector<4x32xf32> to vector<1x4x32xf32>
    tpu.vector_store %arg5[%c0_17, %c0_18, %c64], %19 {strides = array<i32>} : memref<4x4x128xf32, #tpu.memory_space<vmem>>, vector<1x4x32xf32>,
    %c3 = arith.constant 3 : index
    %c0_19 = arith.constant 0 : index
    %20 = tpu.strided_load %arg6[%c3, %c0_19] {strides = array<i32: 4, 1>} : memref<16x32xf32, #tpu.memory_space<vmem>>, vector<4x32xf32>
    %c0_20 = arith.constant 0 : index
    %c0_21 = arith.constant 0 : index
    %c96 = arith.constant 96 : index
    %21 = vector.load %arg5[%c0_20, %c0_21, %c96] : memref<4x4x128xf32, #tpu.memory_space<vmem>>, vector<1x4x32xf32>
    %22 = vector.shape_cast %21 : vector<1x4x32xf32> to vector<4x32xf32>
    %23 = vector.shape_cast %20 : vector<4x32xf32> to vector<1x4x32xf32>
    tpu.vector_store %arg5[%c0_20, %c0_21, %c96], %23 {strides = array<i32>} : memref<4x4x128xf32, #tpu.memory_space<vmem>>, vector<1x4x32xf32>,
    %c1_22 = arith.constant 1 : index
    %c0_23 = arith.constant 0 : index
    %c0_24 = arith.constant 0 : index
    %24 = vector.load %arg2[%c1_22, %c0_23, %c0_24] : memref<4x16x16xf32, #tpu.memory_space<vmem>>, vector<1x16x16xf32>
    %25 = vector.shape_cast %24 : vector<1x16x16xf32> to vector<16x16xf32>
    %cst_25 = arith.constant dense<0.000000e+00> : vector<16x32xf32>
    %26 = tpu.matmul %25, %0, %cst_25 {dimension_numbers = #tpu.dot_dimension_numbers<[0], [0], [1], [1], [0, 1, 1, 1], [], []>} : vector<16x16xf32>, vector<16x32xf32>, vector<16x32xf32> -> vector<16x32xf32>
    %27 = vector.broadcast %1 : vector<1x32xf32> to vector<16x32xf32>
    %28 = arith.addf %26, %27 : vector<16x32xf32>
    %c0_26 = arith.constant 0 : index
    %c0_27 = arith.constant 0 : index
    %29 = vector.load %arg6[%c0_26, %c0_27] : memref<16x32xf32, #tpu.memory_space<vmem>>, vector<16x32xf32>
    tpu.vector_store %arg6[%c0_26, %c0_27], %28 {strides = array<i32>} : memref<16x32xf32, #tpu.memory_space<vmem>>, vector<16x32xf32>,
    %c0_28 = arith.constant 0 : index
    %c0_29 = arith.constant 0 : index
    %30 = tpu.strided_load %arg6[%c0_28, %c0_29] {strides = array<i32: 4, 1>} : memref<16x32xf32, #tpu.memory_space<vmem>>, vector<4x32xf32>
    %c1_30 = arith.constant 1 : index
    %c0_31 = arith.constant 0 : index
    %c0_32 = arith.constant 0 : index
    %31 = vector.load %arg5[%c1_30, %c0_31, %c0_32] : memref<4x4x128xf32, #tpu.memory_space<vmem>>, vector<1x4x32xf32>
    %32 = vector.shape_cast %31 : vector<1x4x32xf32> to vector<4x32xf32>
    %33 = vector.shape_cast %30 : vector<4x32xf32> to vector<1x4x32xf32>
    tpu.vector_store %arg5[%c1_30, %c0_31, %c0_32], %33 {strides = array<i32>} : memref<4x4x128xf32, #tpu.memory_space<vmem>>, vector<1x4x32xf32>,
    %c1_33 = arith.constant 1 : index
    %c0_34 = arith.constant 0 : index
    %34 = tpu.strided_load %arg6[%c1_33, %c0_34] {strides = array<i32: 4, 1>} : memref<16x32xf32, #tpu.memory_space<vmem>>, vector<4x32xf32>
    %c1_35 = arith.constant 1 : index
    %c0_36 = arith.constant 0 : index
    %c32_37 = arith.constant 32 : index
    %35 = vector.load %arg5[%c1_35, %c0_36, %c32_37] : memref<4x4x128xf32, #tpu.memory_space<vmem>>, vector<1x4x32xf32>
    %36 = vector.shape_cast %35 : vector<1x4x32xf32> to vector<4x32xf32>
    %37 = vector.shape_cast %34 : vector<4x32xf32> to vector<1x4x32xf32>
    tpu.vector_store %arg5[%c1_35, %c0_36, %c32_37], %37 {strides = array<i32>} : memref<4x4x128xf32, #tpu.memory_space<vmem>>, vector<1x4x32xf32>,
    %c2_38 = arith.constant 2 : index
    %c0_39 = arith.constant 0 : index
    %38 = tpu.strided_load %arg6[%c2_38, %c0_39] {strides = array<i32: 4, 1>} : memref<16x32xf32, #tpu.memory_space<vmem>>, vector<4x32xf32>
    %c1_40 = arith.constant 1 : index
    %c0_41 = arith.constant 0 : index
    %c64_42 = arith.constant 64 : index
    %39 = vector.load %arg5[%c1_40, %c0_41, %c64_42] : memref<4x4x128xf32, #tpu.memory_space<vmem>>, vector<1x4x32xf32>
    %40 = vector.shape_cast %39 : vector<1x4x32xf32> to vector<4x32xf32>
    %41 = vector.shape_cast %38 : vector<4x32xf32> to vector<1x4x32xf32>
    tpu.vector_store %arg5[%c1_40, %c0_41, %c64_42], %41 {strides = array<i32>} : memref<4x4x128xf32, #tpu.memory_space<vmem>>, vector<1x4x32xf32>,
    %c3_43 = arith.constant 3 : index
    %c0_44 = arith.constant 0 : index
    %42 = tpu.strided_load %arg6[%c3_43, %c0_44] {strides = array<i32: 4, 1>} : memref<16x32xf32, #tpu.memory_space<vmem>>, vector<4x32xf32>
    %c1_45 = arith.constant 1 : index
    %c0_46 = arith.constant 0 : index
    %c96_47 = arith.constant 96 : index
    %43 = vector.load %arg5[%c1_45, %c0_46, %c96_47] : memref<4x4x128xf32, #tpu.memory_space<vmem>>, vector<1x4x32xf32>
    %44 = vector.shape_cast %43 : vector<1x4x32xf32> to vector<4x32xf32>
    %45 = vector.shape_cast %42 : vector<4x32xf32> to vector<1x4x32xf32>
    tpu.vector_store %arg5[%c1_45, %c0_46, %c96_47], %45 {strides = array<i32>} : memref<4x4x128xf32, #tpu.memory_space<vmem>>, vector<1x4x32xf32>,
    %c2_48 = arith.constant 2 : index
    %c0_49 = arith.constant 0 : index
    %c0_50 = arith.constant 0 : index
    %46 = vector.load %arg2[%c2_48, %c0_49, %c0_50] : memref<4x16x16xf32, #tpu.memory_space<vmem>>, vector<1x16x16xf32>
    %47 = vector.shape_cast %46 : vector<1x16x16xf32> to vector<16x16xf32>
    %cst_51 = arith.constant dense<0.000000e+00> : vector<16x32xf32>
    %48 = tpu.matmul %47, %0, %cst_51 {dimension_numbers = #tpu.dot_dimension_numbers<[0], [0], [1], [1], [0, 1, 1, 1], [], []>} : vector<16x16xf32>, vector<16x32xf32>, vector<16x32xf32> -> vector<16x32xf32>
    %49 = vector.broadcast %1 : vector<1x32xf32> to vector<16x32xf32>
    %50 = arith.addf %48, %49 : vector<16x32xf32>
    %c0_52 = arith.constant 0 : index
    %c0_53 = arith.constant 0 : index
    %51 = vector.load %arg6[%c0_52, %c0_53] : memref<16x32xf32, #tpu.memory_space<vmem>>, vector<16x32xf32>
    tpu.vector_store %arg6[%c0_52, %c0_53], %50 {strides = array<i32>} : memref<16x32xf32, #tpu.memory_space<vmem>>, vector<16x32xf32>,
    %c0_54 = arith.constant 0 : index
    %c0_55 = arith.constant 0 : index
    %52 = tpu.strided_load %arg6[%c0_54, %c0_55] {strides = array<i32: 4, 1>} : memref<16x32xf32, #tpu.memory_space<vmem>>, vector<4x32xf32>
    %c2_56 = arith.constant 2 : index
    %c0_57 = arith.constant 0 : index
    %c0_58 = arith.constant 0 : index
    %53 = vector.load %arg5[%c2_56, %c0_57, %c0_58] : memref<4x4x128xf32, #tpu.memory_space<vmem>>, vector<1x4x32xf32>
    %54 = vector.shape_cast %53 : vector<1x4x32xf32> to vector<4x32xf32>
    %55 = vector.shape_cast %52 : vector<4x32xf32> to vector<1x4x32xf32>
    tpu.vector_store %arg5[%c2_56, %c0_57, %c0_58], %55 {strides = array<i32>} : memref<4x4x128xf32, #tpu.memory_space<vmem>>, vector<1x4x32xf32>,
    %c1_59 = arith.constant 1 : index
    %c0_60 = arith.constant 0 : index
    %56 = tpu.strided_load %arg6[%c1_59, %c0_60] {strides = array<i32: 4, 1>} : memref<16x32xf32, #tpu.memory_space<vmem>>, vector<4x32xf32>
    %c2_61 = arith.constant 2 : index
    %c0_62 = arith.constant 0 : index
    %c32_63 = arith.constant 32 : index
    %57 = vector.load %arg5[%c2_61, %c0_62, %c32_63] : memref<4x4x128xf32, #tpu.memory_space<vmem>>, vector<1x4x32xf32>
    %58 = vector.shape_cast %57 : vector<1x4x32xf32> to vector<4x32xf32>
    %59 = vector.shape_cast %56 : vector<4x32xf32> to vector<1x4x32xf32>
    tpu.vector_store %arg5[%c2_61, %c0_62, %c32_63], %59 {strides = array<i32>} : memref<4x4x128xf32, #tpu.memory_space<vmem>>, vector<1x4x32xf32>,
    %c2_64 = arith.constant 2 : index
    %c0_65 = arith.constant 0 : index
    %60 = tpu.strided_load %arg6[%c2_64, %c0_65] {strides = array<i32: 4, 1>} : memref<16x32xf32, #tpu.memory_space<vmem>>, vector<4x32xf32>
    %c2_66 = arith.constant 2 : index
    %c0_67 = arith.constant 0 : index
    %c64_68 = arith.constant 64 : index
    %61 = vector.load %arg5[%c2_66, %c0_67, %c64_68] : memref<4x4x128xf32, #tpu.memory_space<vmem>>, vector<1x4x32xf32>
    %62 = vector.shape_cast %61 : vector<1x4x32xf32> to vector<4x32xf32>
    %63 = vector.shape_cast %60 : vector<4x32xf32> to vector<1x4x32xf32>
    tpu.vector_store %arg5[%c2_66, %c0_67, %c64_68], %63 {strides = array<i32>} : memref<4x4x128xf32, #tpu.memory_space<vmem>>, vector<1x4x32xf32>,
    %c3_69 = arith.constant 3 : index
    %c0_70 = arith.constant 0 : index
    %64 = tpu.strided_load %arg6[%c3_69, %c0_70] {strides = array<i32: 4, 1>} : memref<16x32xf32, #tpu.memory_space<vmem>>, vector<4x32xf32>
    %c2_71 = arith.constant 2 : index
    %c0_72 = arith.constant 0 : index
    %c96_73 = arith.constant 96 : index
    %65 = vector.load %arg5[%c2_71, %c0_72, %c96_73] : memref<4x4x128xf32, #tpu.memory_space<vmem>>, vector<1x4x32xf32>
    %66 = vector.shape_cast %65 : vector<1x4x32xf32> to vector<4x32xf32>
    %67 = vector.shape_cast %64 : vector<4x32xf32> to vector<1x4x32xf32>
    tpu.vector_store %arg5[%c2_71, %c0_72, %c96_73], %67 {strides = array<i32>} : memref<4x4x128xf32, #tpu.memory_space<vmem>>, vector<1x4x32xf32>,
    %c3_74 = arith.constant 3 : index
    %c0_75 = arith.constant 0 : index
    %c0_76 = arith.constant 0 : index
    %68 = vector.load %arg2[%c3_74, %c0_75, %c0_76] : memref<4x16x16xf32, #tpu.memory_space<vmem>>, vector<1x16x16xf32>
    %69 = vector.shape_cast %68 : vector<1x16x16xf32> to vector<16x16xf32>
    %cst_77 = arith.constant dense<0.000000e+00> : vector<16x32xf32>
    %70 = tpu.matmul %69, %0, %cst_77 {dimension_numbers = #tpu.dot_dimension_numbers<[0], [0], [1], [1], [0, 1, 1, 1], [], []>} : vector<16x16xf32>, vector<16x32xf32>, vector<16x32xf32> -> vector<16x32xf32>
    %71 = vector.broadcast %1 : vector<1x32xf32> to vector<16x32xf32>
    %72 = arith.addf %70, %71 : vector<16x32xf32>
    %c0_78 = arith.constant 0 : index
    %c0_79 = arith.constant 0 : index
    %73 = vector.load %arg6[%c0_78, %c0_79] : memref<16x32xf32, #tpu.memory_space<vmem>>, vector<16x32xf32>
    tpu.vector_store %arg6[%c0_78, %c0_79], %72 {strides = array<i32>} : memref<16x32xf32, #tpu.memory_space<vmem>>, vector<16x32xf32>,
    %c0_80 = arith.constant 0 : index
    %c0_81 = arith.constant 0 : index
    %74 = tpu.strided_load %arg6[%c0_80, %c0_81] {strides = array<i32: 4, 1>} : memref<16x32xf32, #tpu.memory_space<vmem>>, vector<4x32xf32>
    %c3_82 = arith.constant 3 : index
    %c0_83 = arith.constant 0 : index
    %c0_84 = arith.constant 0 : index
    %75 = vector.load %arg5[%c3_82, %c0_83, %c0_84] : memref<4x4x128xf32, #tpu.memory_space<vmem>>, vector<1x4x32xf32>
    %76 = vector.shape_cast %75 : vector<1x4x32xf32> to vector<4x32xf32>
    %77 = vector.shape_cast %74 : vector<4x32xf32> to vector<1x4x32xf32>
    tpu.vector_store %arg5[%c3_82, %c0_83, %c0_84], %77 {strides = array<i32>} : memref<4x4x128xf32, #tpu.memory_space<vmem>>, vector<1x4x32xf32>,
    %c1_85 = arith.constant 1 : index
    %c0_86 = arith.constant 0 : index
    %78 = tpu.strided_load %arg6[%c1_85, %c0_86] {strides = array<i32: 4, 1>} : memref<16x32xf32, #tpu.memory_space<vmem>>, vector<4x32xf32>
    %c3_87 = arith.constant 3 : index
    %c0_88 = arith.constant 0 : index
    %c32_89 = arith.constant 32 : index
    %79 = vector.load %arg5[%c3_87, %c0_88, %c32_89] : memref<4x4x128xf32, #tpu.memory_space<vmem>>, vector<1x4x32xf32>
    %80 = vector.shape_cast %79 : vector<1x4x32xf32> to vector<4x32xf32>
    %81 = vector.shape_cast %78 : vector<4x32xf32> to vector<1x4x32xf32>
    tpu.vector_store %arg5[%c3_87, %c0_88, %c32_89], %81 {strides = array<i32>} : memref<4x4x128xf32, #tpu.memory_space<vmem>>, vector<1x4x32xf32>,
    %c2_90 = arith.constant 2 : index
    %c0_91 = arith.constant 0 : index
    %82 = tpu.strided_load %arg6[%c2_90, %c0_91] {strides = array<i32: 4, 1>} : memref<16x32xf32, #tpu.memory_space<vmem>>, vector<4x32xf32>
    %c3_92 = arith.constant 3 : index
    %c0_93 = arith.constant 0 : index
    %c64_94 = arith.constant 64 : index
    %83 = vector.load %arg5[%c3_92, %c0_93, %c64_94] : memref<4x4x128xf32, #tpu.memory_space<vmem>>, vector<1x4x32xf32>
    %84 = vector.shape_cast %83 : vector<1x4x32xf32> to vector<4x32xf32>
    %85 = vector.shape_cast %82 : vector<4x32xf32> to vector<1x4x32xf32>
    tpu.vector_store %arg5[%c3_92, %c0_93, %c64_94], %85 {strides = array<i32>} : memref<4x4x128xf32, #tpu.memory_space<vmem>>, vector<1x4x32xf32>,
    %c3_95 = arith.constant 3 : index
    %c0_96 = arith.constant 0 : index
    %86 = tpu.strided_load %arg6[%c3_95, %c0_96] {strides = array<i32: 4, 1>} : memref<16x32xf32, #tpu.memory_space<vmem>>, vector<4x32xf32>
    %c3_97 = arith.constant 3 : index
    %c0_98 = arith.constant 0 : index
    %c96_99 = arith.constant 96 : index
    %87 = vector.load %arg5[%c3_97, %c0_98, %c96_99] : memref<4x4x128xf32, #tpu.memory_space<vmem>>, vector<1x4x32xf32>
    %88 = vector.shape_cast %87 : vector<1x4x32xf32> to vector<4x32xf32>
    %89 = vector.shape_cast %86 : vector<4x32xf32> to vector<1x4x32xf32>
    tpu.vector_store %arg5[%c3_97, %c0_98, %c96_99], %89 {strides = array<i32>} : memref<4x4x128xf32, #tpu.memory_space<vmem>>, vector<1x4x32xf32>,
    return
  }
  func.func @transform_0(%arg0: i32, %arg1: i32) -> (i32, i32, i32) {
    %c0_i32 = arith.constant 0 : i32
    %c0_i32_0 = arith.constant 0 : i32
    return %arg0, %c0_i32, %arg1 : i32, i32, i32
  }
  func.func @transform_1(%arg0: i32, %arg1: i32) -> (i32, i32) {
    %c0_i32 = arith.constant 0 : i32
    %c0_i32_0 = arith.constant 0 : i32
    %c0_i32_1 = arith.constant 0 : i32
    return %c0_i32, %c0_i32_0 : i32, i32
  }
  func.func @transform_2(%arg0: i32, %arg1: i32) -> (i32, i32) {
    %c0_i32 = arith.constant 0 : i32
    %c0_i32_0 = arith.constant 0 : i32
    %c0_i32_1 = arith.constant 0 : i32
    return %c0_i32, %c0_i32_0 : i32, i32
  }
  func.func @transform_3(%arg0: i32, %arg1: i32) -> (i32, i32, i32) {
    %c0_i32 = arith.constant 0 : i32
    %c0_i32_0 = arith.constant 0 : i32
    return %arg0, %arg1, %c0_i32 : i32, i32, i32
  }
}

module attributes {stable_mosaic.version = 11 : i64} {
  func.func @kernel(%arg0: i32, %arg1: i32, %arg2: memref<4x16x16xf32, #tpu.memory_space<vmem>>, %arg3: memref<16x32xf32, #tpu.memory_space<vmem>>, %arg4: memref<1x32xf32, #tpu.memory_space<vmem>>, %arg5: memref<4x16x32xf32, #tpu.memory_space<vmem>>) attributes {dimension_semantics = [#tpu.dimension_semantics<parallel>, #tpu.dimension_semantics<parallel>], iteration_bounds = array<i64: 2, 1>, scalar_prefetch = 0 : i64, scratch_operands = 0 : i64, tpu.core_type = #tpu.core_type<tc>, window_params = [{transform_indices = @transform_0, window_bounds = array<i64: 4, 16, 16>}, {pipeline_mode = #tpu.pipeline_mode<synchronous>, transform_indices = @transform_1, window_bounds = array<i64: 16, 32>}, {pipeline_mode = #tpu.pipeline_mode<synchronous>, transform_indices = @transform_2, window_bounds = array<i64: 1, 32>}, {transform_indices = @transform_3, window_bounds = array<i64: 4, 16, 32>}]} {
    %c0 = arith.constant 0 : index
    %c0_0 = arith.constant 0 : index
    %0 = vector.load %arg3[%c0, %c0_0] : memref<16x32xf32, #tpu.memory_space<vmem>>, vector<16x32xf32>
    %c0_1 = arith.constant 0 : index
    %c0_2 = arith.constant 0 : index
    %1 = vector.load %arg4[%c0_1, %c0_2] : memref<1x32xf32, #tpu.memory_space<vmem>>, vector<1x32xf32>
    %c0_3 = arith.constant 0 : index
    %c0_4 = arith.constant 0 : index
    %c0_5 = arith.constant 0 : index
    %2 = vector.load %arg2[%c0_3, %c0_4, %c0_5] : memref<4x16x16xf32, #tpu.memory_space<vmem>>, vector<1x16x16xf32>
    %3 = vector.shape_cast %2 : vector<1x16x16xf32> to vector<16x16xf32>
    %cst = arith.constant dense<0.000000e+00> : vector<16x32xf32>
    %4 = tpu.matmul %3, %0, %cst {dimension_numbers = #tpu.dot_dimension_numbers<[0], [0], [1], [1], [0, 1, 1, 1], [], []>} : vector<16x16xf32>, vector<16x32xf32>, vector<16x32xf32> -> vector<16x32xf32>
    %5 = vector.broadcast %1 : vector<1x32xf32> to vector<16x32xf32>
    %6 = arith.addf %4, %5 : vector<16x32xf32>
    %c0_6 = arith.constant 0 : index
    %c0_7 = arith.constant 0 : index
    %c0_8 = arith.constant 0 : index
    %7 = vector.load %arg5[%c0_6, %c0_7, %c0_8] : memref<4x16x32xf32, #tpu.memory_space<vmem>>, vector<1x16x32xf32>
    %8 = vector.shape_cast %7 : vector<1x16x32xf32> to vector<16x32xf32>
    %9 = vector.shape_cast %6 : vector<16x32xf32> to vector<1x16x32xf32>
    tpu.vector_store %arg5[%c0_6, %c0_7, %c0_8], %9 {strides = array<i32>} : memref<4x16x32xf32, #tpu.memory_space<vmem>>, vector<1x16x32xf32>,
    %c1 = arith.constant 1 : index
    %c0_9 = arith.constant 0 : index
    %c0_10 = arith.constant 0 : index
    %10 = vector.load %arg2[%c1, %c0_9, %c0_10] : memref<4x16x16xf32, #tpu.memory_space<vmem>>, vector<1x16x16xf32>
    %11 = vector.shape_cast %10 : vector<1x16x16xf32> to vector<16x16xf32>
    %cst_11 = arith.constant dense<0.000000e+00> : vector<16x32xf32>
    %12 = tpu.matmul %11, %0, %cst_11 {dimension_numbers = #tpu.dot_dimension_numbers<[0], [0], [1], [1], [0, 1, 1, 1], [], []>} : vector<16x16xf32>, vector<16x32xf32>, vector<16x32xf32> -> vector<16x32xf32>
    %13 = vector.broadcast %1 : vector<1x32xf32> to vector<16x32xf32>
    %14 = arith.addf %12, %13 : vector<16x32xf32>
    %c1_12 = arith.constant 1 : index
    %c0_13 = arith.constant 0 : index
    %c0_14 = arith.constant 0 : index
    %15 = vector.load %arg5[%c1_12, %c0_13, %c0_14] : memref<4x16x32xf32, #tpu.memory_space<vmem>>, vector<1x16x32xf32>
    %16 = vector.shape_cast %15 : vector<1x16x32xf32> to vector<16x32xf32>
    %17 = vector.shape_cast %14 : vector<16x32xf32> to vector<1x16x32xf32>
    tpu.vector_store %arg5[%c1_12, %c0_13, %c0_14], %17 {strides = array<i32>} : memref<4x16x32xf32, #tpu.memory_space<vmem>>, vector<1x16x32xf32>,
    %c2 = arith.constant 2 : index
    %c0_15 = arith.constant 0 : index
    %c0_16 = arith.constant 0 : index
    %18 = vector.load %arg2[%c2, %c0_15, %c0_16] : memref<4x16x16xf32, #tpu.memory_space<vmem>>, vector<1x16x16xf32>
    %19 = vector.shape_cast %18 : vector<1x16x16xf32> to vector<16x16xf32>
    %cst_17 = arith.constant dense<0.000000e+00> : vector<16x32xf32>
    %20 = tpu.matmul %19, %0, %cst_17 {dimension_numbers = #tpu.dot_dimension_numbers<[0], [0], [1], [1], [0, 1, 1, 1], [], []>} : vector<16x16xf32>, vector<16x32xf32>, vector<16x32xf32> -> vector<16x32xf32>
    %21 = vector.broadcast %1 : vector<1x32xf32> to vector<16x32xf32>
    %22 = arith.addf %20, %21 : vector<16x32xf32>
    %c2_18 = arith.constant 2 : index
    %c0_19 = arith.constant 0 : index
    %c0_20 = arith.constant 0 : index
    %23 = vector.load %arg5[%c2_18, %c0_19, %c0_20] : memref<4x16x32xf32, #tpu.memory_space<vmem>>, vector<1x16x32xf32>
    %24 = vector.shape_cast %23 : vector<1x16x32xf32> to vector<16x32xf32>
    %25 = vector.shape_cast %22 : vector<16x32xf32> to vector<1x16x32xf32>
    tpu.vector_store %arg5[%c2_18, %c0_19, %c0_20], %25 {strides = array<i32>} : memref<4x16x32xf32, #tpu.memory_space<vmem>>, vector<1x16x32xf32>,
    %c3 = arith.constant 3 : index
    %c0_21 = arith.constant 0 : index
    %c0_22 = arith.constant 0 : index
    %26 = vector.load %arg2[%c3, %c0_21, %c0_22] : memref<4x16x16xf32, #tpu.memory_space<vmem>>, vector<1x16x16xf32>
    %27 = vector.shape_cast %26 : vector<1x16x16xf32> to vector<16x16xf32>
    %cst_23 = arith.constant dense<0.000000e+00> : vector<16x32xf32>
    %28 = tpu.matmul %27, %0, %cst_23 {dimension_numbers = #tpu.dot_dimension_numbers<[0], [0], [1], [1], [0, 1, 1, 1], [], []>} : vector<16x16xf32>, vector<16x32xf32>, vector<16x32xf32> -> vector<16x32xf32>
    %29 = vector.broadcast %1 : vector<1x32xf32> to vector<16x32xf32>
    %30 = arith.addf %28, %29 : vector<16x32xf32>
    %c3_24 = arith.constant 3 : index
    %c0_25 = arith.constant 0 : index
    %c0_26 = arith.constant 0 : index
    %31 = vector.load %arg5[%c3_24, %c0_25, %c0_26] : memref<4x16x32xf32, #tpu.memory_space<vmem>>, vector<1x16x32xf32>
    %32 = vector.shape_cast %31 : vector<1x16x32xf32> to vector<16x32xf32>
    %33 = vector.shape_cast %30 : vector<16x32xf32> to vector<1x16x32xf32>
    tpu.vector_store %arg5[%c3_24, %c0_25, %c0_26], %33 {strides = array<i32>} : memref<4x16x32xf32, #tpu.memory_space<vmem>>, vector<1x16x32xf32>,
    return
  }
  func.func @transform_0(%arg0: i32, %arg1: i32) -> (i32, i32, i32) {
    %c0_i32 = arith.constant 0 : i32
    %c0_i32_0 = arith.constant 0 : i32
    return %arg0, %c0_i32, %arg1 : i32, i32, i32
  }
  func.func @transform_1(%arg0: i32, %arg1: i32) -> (i32, i32) {
    %c0_i32 = arith.constant 0 : i32
    %c0_i32_0 = arith.constant 0 : i32
    %c0_i32_1 = arith.constant 0 : i32
    return %c0_i32, %c0_i32_0 : i32, i32
  }
  func.func @transform_2(%arg0: i32, %arg1: i32) -> (i32, i32) {
    %c0_i32 = arith.constant 0 : i32
    %c0_i32_0 = arith.constant 0 : i32
    %c0_i32_1 = arith.constant 0 : i32
    return %c0_i32, %c0_i32_0 : i32, i32
  }
  func.func @transform_3(%arg0: i32, %arg1: i32) -> (i32, i32, i32) {
    %c0_i32 = arith.constant 0 : i32
    %c0_i32_0 = arith.constant 0 : i32
    return %arg0, %arg1, %c0_i32 : i32, i32, i32
  }
}

</mosaic_0001>

<llo_original>
// kernel: tpu_custom_call.1
$region0: #{tpu_custom_call.1}
  #allocation0 [shape = 'u32[]', space=smem, size = 0x4, offset = 0x4, fixed_abs, tag = 'smem constant byte address 0x4 - core index']
  #allocation1 [shape = 'u32[144,128]{1,0:T(1,128)}', space=vmem, size = 0x12000, scoped, tag = 'internal scratch']
  #allocation2 [shape = 'f32[16,32]{1,0:T(8,128)}', space=vmem, size = 0x2000, scoped, tag = 'scratch operand']
  %s0 = inlined_call_operand.hbm [shape: f32[8,16,16], index: 0, kind: input, shape index: {}]
  %s1 = inlined_call_operand.hbm [shape: f32[16,32], index: 1, kind: input, shape index: {}]
  %s2 = inlined_call_operand.vmem [shape: f32[1,32], index: 2, kind: input, shape index: {}]
  %s3 = inlined_call_operand.hbm [shape: f32[8,4,128], index: 3, kind: output, shape index: {}]
  %s4 = sld [smem:[#allocation0]]
  $region53: #{tpu_custom_call.1} parent=0
    _
  %s6 = ssub.s32 1, %s4
  %s7 = scalar_select 0, %s6, %s4
  $region1: #{tpu_custom_call.1} parent=0
    #allocation3 [shape = 'u8[65536]{0}', space=vmem, size = 0x10000, scoped, tag = 'input window, operand 0']
    #allocation4 [shape = 's32[2]{0}', space=sflag, size = 0x8, scoped, tag = 'scoped memory for tpu_custom_call.1']
    #allocation5 [shape = 's32[2]{0}', space=sflag, size = 0x8, scoped, tag = 'scoped memory for tpu_custom_call.1']
    #allocation6 [shape = 'u8[8192]{0}', space=vmem, size = 0x2000, scoped, tag = 'input window, operand 1, single buffered']
    #allocation7 [shape = 's32[1]{0}', space=sflag, size = 0x4, scoped, tag = 'scoped memory for tpu_custom_call.1']
    #allocation8 [shape = 'u8[16384]{0}', space=vmem, size = 0x4000, scoped, tag = 'output window, operand 0']
    %8 = vsyncpa [#allocation4], 0
    %s9 = scalar_lea.sflag [#allocation4], 1
    %10 = vsyncpa %s9, 0
    %11 = vsyncpa [#allocation7], 0
    %12 = vsyncpa [#allocation5], 0
    %s13 = scalar_lea.sflag [#allocation5], 1
    %14 = vsyncpa %s13, 0
    loop: start=0, step=1, limit=4
    $region2: #{tpu_custom_call.1} parent=1 // loop_pre_header
      _
    $region3: #{tpu_custom_call.1} parent=1 // loop_header
      %s16 = sphi 0, %s20
      %p17 = scmp.ge.s32.totalorder %s16, 4
      %s23 = sphi 0, %s35
      %s24 = sphi 0, %s31
      %s25 = sphi 0, %s23
      %s26 = sphi 0, %s24
      %s27 = sphi 0, %s25
      %s28 = sphi 0, %s26
      %s40 = sphi 0, %s42
      %s43 = sphi 0, %s40
      %s44 = sphi 0, %s43
      %s60 = sphi 0, %s44
      %s64 = sphi 0, %s64
      %s66 = sphi 0, %s64
      %s67 = sphi 0, %s66
      %s81 = sphi 0, %s67
      %s85 = sphi 0, %s85
      %s87 = sphi 0, %s85
      %s88 = sphi 0, %s87
      %s102 = sphi 0, %s88
      %s110 = sphi 0, %s112
      %s113 = sphi 0, %s110
      %s114 = sphi 0, %s113
      %s130 = sphi 0, %s114
    $region4: #{tpu_custom_call.1} parent=1 // loop_header_branch
      %19 = sbr.rel (%p17) target = $region8
    $region5: #{tpu_custom_call.1} parent=1 // loop_body
      %s21 = ssub.s32 %s16, 1
      %s22 = ssub.s32 %s16, 2
      %s29 = sadd.s32 1, %s24
      %p30 = scmp.ge.s32.totalorder %s29, 1
      %s31 = scalar_select %p30, 0, %s29
      %s32 = sadd.s32 1, %s23
      %s33 = scalar_select %p30, %s32, %s23
      %p34 = scmp.ge.s32.totalorder %s33, 2
      %s35 = scalar_select %p34, 0, %s33
      %s36 = ssub.s32 %s23, %s35
      %s37 = ssub.s32 %s24, %s31
      %s38 = sor.u32 %s36, %s37
      %p39 = scmp.eq.s32.totalorder %s38, 0
      %s41 = sadd.s32 %s40, 1
      %s42 = scalar_select %p39, %s40, %s41
      %p45 = pneg %p39
      %p46 = scmp.eq.s32.totalorder %s16, 1
      %p47 = por %p45, %p46
      %p48 = scmp.ne.s32.totalorder %s40, %s43
      %p49 = scmp.eq.s32.totalorder %s16, 0
      %p50 = por %p48, %p49
      %p51 = scmp.ne.s32.totalorder %s40, %s43
      %p52 = scmp.eq.s32.totalorder %s21, 1
      %p53 = por %p51, %p52
      %p54 = scmp.ne.s32.totalorder %s43, %s44
      %p55 = scmp.eq.s32.totalorder %s21, 0
      %p56 = por %p54, %p55
      %p57 = scmp.ne.s32.totalorder %s43, %s44
      %p58 = scmp.eq.s32.totalorder %s22, 1
      %p59 = por %p57, %p58
      %p61 = scmp.ne.s32.totalorder %s44, %s60
      %p62 = scmp.eq.s32.totalorder %s22, 0
      %p63 = por %p61, %p62
      %s65 = sadd.s32 %s64, 1
      %p68 = scmp.eq.s32.totalorder %s16, 1
      %p69 = scmp.ne.s32.totalorder %s64, %s66
      %p70 = scmp.eq.s32.totalorder %s16, 0
      %p71 = por %p69, %p70
      %p72 = scmp.ne.s32.totalorder %s64, %s66
      %p73 = scmp.eq.s32.totalorder %s21, 1
      %p74 = por %p72, %p73
      %p75 = scmp.ne.s32.totalorder %s66, %s67
      %p76 = scmp.eq.s32.totalorder %s21, 0
      %p77 = por %p75, %p76
      %p78 = scmp.ne.s32.totalorder %s66, %s67
      %p79 = scmp.eq.s32.totalorder %s22, 1
      %p80 = por %p78, %p79
      %p82 = scmp.ne.s32.totalorder %s67, %s81
      %p83 = scmp.eq.s32.totalorder %s22, 0
      %p84 = por %p82, %p83
      %s86 = sadd.s32 %s85, 1
      %p89 = scmp.eq.s32.totalorder %s16, 1
      %p90 = scmp.ne.s32.totalorder %s85, %s87
      %p91 = scmp.eq.s32.totalorder %s16, 0
      %p92 = por %p90, %p91
      %p93 = scmp.ne.s32.totalorder %s85, %s87
      %p94 = scmp.eq.s32.totalorder %s21, 1
      %p95 = por %p93, %p94
      %p96 = scmp.ne.s32.totalorder %s87, %s88
      %p97 = scmp.eq.s32.totalorder %s21, 0
      %p98 = por %p96, %p97
      %p99 = scmp.ne.s32.totalorder %s87, %s88
      %p100 = scmp.eq.s32.totalorder %s22, 1
      %p101 = por %p99, %p100
      %p103 = scmp.ne.s32.totalorder %s88, %s102
      %p104 = scmp.eq.s32.totalorder %s22, 0
      %p105 = por %p103, %p104
      %s106 = ssub.s32 %s23, %s35
      %s107 = ssub.s32 %s24, %s31
      %s108 = sor.u32 %s106, %s107
      %p109 = scmp.eq.s32.totalorder %s108, 0
      %s111 = sadd.s32 %s110, 1
      %s112 = scalar_select %p109, %s110, %s111
      %p115 = pneg %p109
      %p116 = scmp.eq.s32.totalorder %s16, 1
      %p117 = por %p115, %p116
      %p118 = scmp.ne.s32.totalorder %s110, %s113
      %p119 = scmp.eq.s32.totalorder %s16, 0
      %p120 = por %p118, %p119
      %p121 = scmp.ne.s32.totalorder %s110, %s113
      %p122 = scmp.eq.s32.totalorder %s21, 1
      %p123 = por %p121, %p122
      %p124 = scmp.ne.s32.totalorder %s113, %s114
      %p125 = scmp.eq.s32.totalorder %s21, 0
      %p126 = por %p124, %p125
      %p127 = scmp.ne.s32.totalorder %s113, %s114
      %p128 = scmp.eq.s32.totalorder %s22, 1
      %p129 = por %p127, %p128
      %p131 = scmp.ne.s32.totalorder %s114, %s130
      %p132 = scmp.eq.s32.totalorder %s22, 0
      %p133 = por %p131, %p132
      %p134 = scmp.le.s32.totalorder 1, %s16
      %p135 = scmp.lt.s32.totalorder %s16, 3
      %p136 = pnand %p134, %p135
      %p137 = pneg %p136
      // Predicated region
      $region9: #{tpu_custom_call.1} parent=5 // pred_check
        _
      $region10: #{tpu_custom_call.1} parent=5 // pred_check_branch
        %139 = sbr.rel (%p136) target = $region12
      $region11: #{tpu_custom_call.1} parent=5 // pred_region
        %s140 = ssub.s32 %s16, 1
        // Predicated region
        $region13: #{tpu_custom_call.1} parent=11 // pred_check
          %p141 = pneg %p77
        $region14: #{tpu_custom_call.1} parent=11 // pred_check_branch
          %143 = sbr.rel (%p141) target = $region16
        $region15: #{tpu_custom_call.1} parent=11 // pred_region
          %s145 = ssub.s32 256, 256
          %146 = vsyncadd [#allocation7], %s145
          %s147 = sshll.u32 [#allocation6], 4
          %s148 = int_to_ptr.vmem [resolvable:$true] %s147
          %153 = dma.hbm_to_vmem [thread:$0]  %s1, 256, %s148, [#allocation7], 128, 128, 8
        $region16: #{tpu_custom_call.1} parent=11 // pred_fallthru
          _
        // Predicated region
        $region17: #{tpu_custom_call.1} parent=11 // pred_check
          %p154 = pneg %p98
        $region18: #{tpu_custom_call.1} parent=11 // pred_check_branch
          %156 = sbr.rel (%p154) target = $region20
        $region19: #{tpu_custom_call.1} parent=11 // pred_region
          _
        $region20: #{tpu_custom_call.1} parent=11 // pred_fallthru
          _
      $region12: #{tpu_custom_call.1} parent=5 // pred_fallthru
        _
      %p157 = scmp.lt.s32.totalorder %s16, 2
      // Predicated region
      $region21: #{tpu_custom_call.1} parent=5 // pred_check
        %p158 = pneg %p157
      $region22: #{tpu_custom_call.1} parent=5 // pred_check_branch
        %160 = sbr.rel (%p158) target = $region24
      $region23: #{tpu_custom_call.1} parent=5 // pred_region
        // Predicated region
        $region25: #{tpu_custom_call.1} parent=23 // pred_check
          %p161 = pneg %p50
        $region26: #{tpu_custom_call.1} parent=23 // pred_check_branch
          %163 = sbr.rel (%p161) target = $region28
        $region27: #{tpu_custom_call.1} parent=23 // pred_region
          %s164 = sand.u32 %s40, 1
          %s165 = scalar_lea.sflag [#allocation4], %s164
          %s166 = sand.u32 %s40, 1
          %s167 = smul.addr %s166, 64
          %s168 = scalar_lea.vmem [#allocation3], %s167
          %s169 = smul.u32 4, %s23
          %s171 = ssub.s32 1024, 1024
          %172 = vsyncadd %s165, %s171
          %s173 = smul.addr %s169, 2
          %s174 = sadd.s32 %s24, %s173
          %s175 = smul.addr %s174, 128
          %s176 = scalar_lea.hbm %s0, %s175
          %s177 = sshll.u32 %s168, 4
          %s178 = int_to_ptr.vmem [resolvable:$true] %s177
          %183 = dma.hbm_to_vmem [thread:$0]  %s176, 1024, %s178, %s165, 128, 128, 8
        $region28: #{tpu_custom_call.1} parent=23 // pred_fallthru
          _
      $region24: #{tpu_custom_call.1} parent=5 // pred_fallthru
        _
      %p184 = scmp.le.s32.totalorder 1, %s16
      %p185 = scmp.lt.s32.totalorder %s16, 3
      %p186 = pnand %p184, %p185
      %p187 = pneg %p186
      // Predicated region
      $region29: #{tpu_custom_call.1} parent=5 // pred_check
        _
      $region30: #{tpu_custom_call.1} parent=5 // pred_check_branch
        %189 = sbr.rel (%p186) target = $region32
      $region31: #{tpu_custom_call.1} parent=5 // pred_region
        %s190 = ssub.s32 %s16, 1
        %s191 = sand.u32 %s43, 1
        %s192 = scalar_lea.sflag [#allocation4], %s191
        %s193 = sand.u32 %s43, 1
        %s194 = smul.addr %s193, 64
        %s195 = scalar_lea.vmem [#allocation3], %s194
        // Predicated region
        $region33: #{tpu_custom_call.1} parent=31 // pred_check
          %p196 = pneg %p56
        $region34: #{tpu_custom_call.1} parent=31 // pred_check_branch
          %198 = sbr.rel (%p196) target = $region36
        $region35: #{tpu_custom_call.1} parent=31 // pred_region
          %199 = dma.done %s192, 1024
        $region36: #{tpu_custom_call.1} parent=31 // pred_fallthru
          _
        // Predicated region
        $region37: #{tpu_custom_call.1} parent=31 // pred_check
          %p200 = pneg %p77
        $region38: #{tpu_custom_call.1} parent=31 // pred_check_branch
          %202 = sbr.rel (%p200) target = $region40
        $region39: #{tpu_custom_call.1} parent=31 // pred_region
          %203 = dma.done [#allocation7], 256
        $region40: #{tpu_custom_call.1} parent=31 // pred_fallthru
          _
        %s204 = sand.u32 %s43, 1
        %s205 = scalar_lea.sflag [#allocation4], %s204
        %s206 = sand.u32 %s43, 1
        %s207 = smul.addr %s206, 64
        %s208 = scalar_lea.vmem [#allocation3], %s207
        %p209 = pneg %p56
        %p210 = pneg %p53
        %p211 = pneg %p77
        %p212 = pneg %p74
        %p213 = pneg %p98
        %p214 = pneg %p95
        %p215 = pneg %p126
        %p216 = pneg %p123
        %s217 = sand.u32 %s113, 1
        %s218 = scalar_lea.sflag [#allocation5], %s217
        %s219 = sand.u32 %s113, 1
        %s220 = smul.addr %s219, 16
        %s221 = scalar_lea.vmem [#allocation8], %s220
        %s222 = smul.u32 4, %s25
        %s223 = smul.u32 4, %s25
        %v224 = vld [vmem:[#allocation6] sm:$0xff]
        %v225 = vld [vmem:[#allocation6 + $0x8] sm:$0xff]
        %v226 = vld [vmem:[%s2] sm:$0x1]
        %v227 = vld [vmem:[%s195] sm:$0xff]
        %v228 = vld [vmem:[%s195 + $0x8] sm:$0xff]
        %v230 = vlaneseq
        %v231 = vshrl.u32 %v230, 7
        %v232 = vsub.s32 0, %v231
        %v233 = vrot.slane %v226, %v232
        %235 = vxpose.xlu0.b32.start [1/16] %v227, 128
        %236 = vxpose.xlu0.b32.cont [2/16] %v228, 128
        %237 = vxpose.xlu0.b32.cont [3/16] 0.0, 128
        %238 = vxpose.xlu0.b32.cont [4/16] 0.0, 128
        %239 = vxpose.xlu0.b32.cont [5/16] 0.0, 128
        %240 = vxpose.xlu0.b32.cont [6/16] 0.0, 128
        %241 = vxpose.xlu0.b32.cont [7/16] 0.0, 128
        %242 = vxpose.xlu0.b32.cont [8/16] 0.0, 128
        %243 = vxpose.xlu0.b32.cont [9/16] 0.0, 128
        %244 = vxpose.xlu0.b32.cont [10/16] 0.0, 128
        %245 = vxpose.xlu0.b32.cont [11/16] 0.0, 128
        %246 = vxpose.xlu0.b32.cont [12/16] 0.0, 128
        %247 = vxpose.xlu0.b32.cont [13/16] 0.0, 128
        %248 = vxpose.xlu0.b32.cont [14/16] 0.0, 128
        %249 = vxpose.xlu0.b32.cont [15/16] 0.0, 128
        %250 = vxpose.xlu0.b32.end [16/16] 0.0, 128
        %v251 = vpop.trf.xlu0
        %v252 = vpop.trf.xlu0
        %v253 = vpop.trf.xlu0
        %v254 = vpop.trf.xlu0
        %v255 = vpop.trf.xlu0
        %v256 = vpop.trf.xlu0
        %v257 = vpop.trf.xlu0
        %v258 = vpop.trf.xlu0
        %v259 = vpop.trf.xlu0
        %v260 = vpop.trf.xlu0
        %v261 = vpop.trf.xlu0
        %v262 = vpop.trf.xlu0
        %v263 = vpop.trf.xlu0
        %v264 = vpop.trf.xlu0
        %v265 = vpop.trf.xlu0
        %v266 = vpop.trf.xlu0
        %vm267 = vcmask 130048
        %v269 = vsel %vm267, %v251, 0
        %v272 = vsel %vm267, %v252, 0
        %274 = vmatprep.subr.mxu0 0.0
        %275 = vmatpush1.msra.mxu0 0.0
        %276 = vmatprep.subr.mxu0 0.0
        %277 = vmatpush1.msra.mxu0 0.0
        %278 = vmatprep.subr.mxu0 0.0
        %279 = vmatpush1.msra.mxu0 0.0
        %280 = vmatprep.subr.mxu0 0.0
        %281 = vmatpush1.msra.mxu0 0.0
        %282 = vmatprep.subr.mxu0 0.0
        %283 = vmatpush1.msra.mxu0 0.0
        %284 = vmatprep.subr.mxu0 0.0
        %285 = vmatpush1.msra.mxu0 0.0
        %286 = vmatprep.subr.mxu0 0.0
        %287 = vmatpush1.msra.mxu0 0.0
        %288 = vmatprep.subr.mxu0 0.0
        %289 = vmatpush1.msra.mxu0 0.0
        %290 = vmatprep.subr.mxu0 0.0
        %291 = vmatpush1.msra.mxu0 0.0
        %292 = vmatprep.subr.mxu0 0.0
        %293 = vmatpush1.msra.mxu0 0.0
        %294 = vmatprep.subr.mxu0 0.0
        %295 = vmatpush1.msra.mxu0 0.0
        %296 = vmatprep.subr.mxu0 0.0
        %297 = vmatpush1.msra.mxu0 0.0
        %298 = vmatprep.subr.mxu0 0.0
        %299 = vmatpush1.msra.mxu0 0.0
        %300 = vmatprep.subr.mxu0 0.0
        %301 = vmatpush1.msra.mxu0 0.0
        %302 = vmatprep.subr.mxu0 0.0
        %303 = vmatpush1.msra.mxu0 %v225
        %304 = vmatprep.subr.mxu0 0.0
        %305 = vmatpush1.msra.mxu0 %v224
        %306 = vmatprep.subr.mxu0 0.0
        %307 = vmatpush2.msra.mxu0 0.0
        %308 = vmatprep.subr.mxu0 0.0
        %309 = vmatpush2.msra.mxu0 0.0
        %310 = vmatprep.subr.mxu0 0.0
        %311 = vmatpush2.msra.mxu0 0.0
        %312 = vmatprep.subr.mxu0 0.0
        %313 = vmatpush2.msra.mxu0 0.0
        %314 = vmatprep.subr.mxu0 0.0
        %315 = vmatpush2.msra.mxu0 0.0
        %316 = vmatprep.subr.mxu0 0.0
        %317 = vmatpush2.msra.mxu0 0.0
        %318 = vmatprep.subr.mxu0 0.0
        %319 = vmatpush2.msra.mxu0 0.0
        %320 = vmatprep.subr.mxu0 0.0
        %321 = vmatpush2.msra.mxu0 0.0
        %322 = vmatprep.subr.mxu0 0.0
        %323 = vmatpush2.msra.mxu0 0.0
        %324 = vmatprep.subr.mxu0 0.0
        %325 = vmatpush2.msra.mxu0 0.0
        %326 = vmatprep.subr.mxu0 0.0
        %327 = vmatpush2.msra.mxu0 0.0
        %328 = vmatprep.subr.mxu0 0.0
        %329 = vmatpush2.msra.mxu0 0.0
        %330 = vmatprep.subr.mxu0 0.0
        %331 = vmatpush2.msra.mxu0 0.0
        %332 = vmatprep.subr.mxu0 0.0
        %333 = vmatpush2.msra.mxu0 0.0
        %334 = vmatprep.subr.mxu0 0.0
        %335 = vmatpush2.msra.mxu0 0.0
        %336 = vmatprep.subr.mxu0 0.0
        %337 = vmatpush2.msra.mxu0 0.0
        %338 = vmatprep.mubr.f32.mxu0 0.0
        %339 = vmatmul.mubr.f32.gmra.mxu0 %v269
        %v340 = vpop.f32.mrf.mxu0
        %v341 = vadd.f32 %v233, %v340
        %v342 = vpop.f32.mrf.mxu0
        %343 = vmatprep.mubr.f32.mxu0 0.0
        %344 = vmatmul.mubr.f32.gmra.mxu0 %v272
        %v345 = vpop.f32.mrf.mxu0
        %v346 = vadd.f32 %v233, %v345
        %v347 = vpop.f32.mrf.mxu0
        %348 = vdwg.mxu0
        %vm349 = vcmask 261120
        %350 = vst.msk [vmem:[#allocation2] sm:$0xff] %vm349, %v341
        %351 = vst.msk [vmem:[#allocation2 + $0x8] sm:$0xff] %vm349, %v346
        %v352 = vld [vmem:[#allocation2] ss:$4 sm:$0xf]
        %vm353 = vcmask 257024
        %354 = vst.msk [vmem:[%s221] sm:$0xf] %vm353, %v352
        %s355 = scalar_lea.vmem [#allocation2], 1
        %v356 = vld [vmem:[%s355] ss:$4 sm:$0xf]
        %358 = vrot.lane.b32.xlu0 %v356, 32
        %v359 = vpop.permute.xlu0 %358
        %vm361 = vcmask 519424
        %362 = vst.msk [vmem:[%s221] sm:$0xf] %vm361, %v359
        %s363 = scalar_lea.vmem [#allocation2], 2
        %v364 = vld [vmem:[%s363] ss:$4 sm:$0xf]
        %366 = vrot.lane.b32.xlu0 %v364, 64
        %v367 = vpop.permute.xlu0 %366
        %vm369 = vcmask 781824
        %370 = vst.msk [vmem:[%s221] sm:$0xf] %vm369, %v367
        %s371 = scalar_lea.vmem [#allocation2], 3
        %v372 = vld [vmem:[%s371] ss:$4 sm:$0xf]
        %374 = vrot.lane.b32.xlu0 %v372, 96
        %v375 = vpop.permute.xlu0 %374
        %vm377 = vcmask 1044224
        %378 = vst.msk [vmem:[%s221] sm:$0xf] %vm377, %v375
        %s379 = scalar_lea.vmem %s195, 16 [#allocation3]
        %v380 = vld [vmem:[%s379] sm:$0xff]
        %v381 = vld [vmem:[%s379 + $0x8] sm:$0xff]
        %382 = vxpose.xlu0.b32.start [1/16] %v380, 128
        %383 = vxpose.xlu0.b32.cont [2/16] %v381, 128
        %384 = vxpose.xlu0.b32.cont [3/16] 0.0, 128
        %385 = vxpose.xlu0.b32.cont [4/16] 0.0, 128
        %386 = vxpose.xlu0.b32.cont [5/16] 0.0, 128
        %387 = vxpose.xlu0.b32.cont [6/16] 0.0, 128
        %388 = vxpose.xlu0.b32.cont [7/16] 0.0, 128
        %389 = vxpose.xlu0.b32.cont [8/16] 0.0, 128
        %390 = vxpose.xlu0.b32.cont [9/16] 0.0, 128
        %391 = vxpose.xlu0.b32.cont [10/16] 0.0, 128
        %392 = vxpose.xlu0.b32.cont [11/16] 0.0, 128
        %393 = vxpose.xlu0.b32.cont [12/16] 0.0, 128
        %394 = vxpose.xlu0.b32.cont [13/16] 0.0, 128
        %395 = vxpose.xlu0.b32.cont [14/16] 0.0, 128
        %396 = vxpose.xlu0.b32.cont [15/16] 0.0, 128
        %397 = vxpose.xlu0.b32.end [16/16] 0.0, 128
        %v398 = vpop.trf.xlu0
        %v399 = vpop.trf.xlu0
        %v400 = vpop.trf.xlu0
        %v401 = vpop.trf.xlu0
        %v402 = vpop.trf.xlu0
        %v403 = vpop.trf.xlu0
        %v404 = vpop.trf.xlu0
        %v405 = vpop.trf.xlu0
        %v406 = vpop.trf.xlu0
        %v407 = vpop.trf.xlu0
        %v408 = vpop.trf.xlu0
        %v409 = vpop.trf.xlu0
        %v410 = vpop.trf.xlu0
        %v411 = vpop.trf.xlu0
        %v412 = vpop.trf.xlu0
        %v413 = vpop.trf.xlu0
        %v415 = vsel %vm267, %v398, 0
        %v418 = vsel %vm267, %v399, 0
        %420 = vmatprep.subr.mxu0 0.0
        %421 = vmatpush1.msra.mxu0 0.0
        %422 = vmatprep.subr.mxu0 0.0
        %423 = vmatpush1.msra.mxu0 0.0
        %424 = vmatprep.subr.mxu0 0.0
        %425 = vmatpush1.msra.mxu0 0.0
        %426 = vmatprep.subr.mxu0 0.0
        %427 = vmatpush1.msra.mxu0 0.0
        %428 = vmatprep.subr.mxu0 0.0
        %429 = vmatpush1.msra.mxu0 0.0
        %430 = vmatprep.subr.mxu0 0.0
        %431 = vmatpush1.msra.mxu0 0.0
        %432 = vmatprep.subr.mxu0 0.0
        %433 = vmatpush1.msra.mxu0 0.0
        %434 = vmatprep.subr.mxu0 0.0
        %435 = vmatpush1.msra.mxu0 0.0
        %436 = vmatprep.subr.mxu0 0.0
        %437 = vmatpush1.msra.mxu0 0.0
        %438 = vmatprep.subr.mxu0 0.0
        %439 = vmatpush1.msra.mxu0 0.0
        %440 = vmatprep.subr.mxu0 0.0
        %441 = vmatpush1.msra.mxu0 0.0
        %442 = vmatprep.subr.mxu0 0.0
        %443 = vmatpush1.msra.mxu0 0.0
        %444 = vmatprep.subr.mxu0 0.0
        %445 = vmatpush1.msra.mxu0 0.0
        %446 = vmatprep.subr.mxu0 0.0
        %447 = vmatpush1.msra.mxu0 0.0
        %448 = vmatprep.subr.mxu0 0.0
        %449 = vmatpush1.msra.mxu0 %v225
        %450 = vmatprep.subr.mxu0 0.0
        %451 = vmatpush1.msra.mxu0 %v224
        %452 = vmatprep.subr.mxu0 0.0
        %453 = vmatpush2.msra.mxu0 0.0
        %454 = vmatprep.subr.mxu0 0.0
        %455 = vmatpush2.msra.mxu0 0.0
        %456 = vmatprep.subr.mxu0 0.0
        %457 = vmatpush2.msra.mxu0 0.0
        %458 = vmatprep.subr.mxu0 0.0
        %459 = vmatpush2.msra.mxu0 0.0
        %460 = vmatprep.subr.mxu0 0.0
        %461 = vmatpush2.msra.mxu0 0.0
        %462 = vmatprep.subr.mxu0 0.0
        %463 = vmatpush2.msra.mxu0 0.0
        %464 = vmatprep.subr.mxu0 0.0
        %465 = vmatpush2.msra.mxu0 0.0
        %466 = vmatprep.subr.mxu0 0.0
        %467 = vmatpush2.msra.mxu0 0.0
        %468 = vmatprep.subr.mxu0 0.0
        %469 = vmatpush2.msra.mxu0 0.0
        %470 = vmatprep.subr.mxu0 0.0
        %471 = vmatpush2.msra.mxu0 0.0
        %472 = vmatprep.subr.mxu0 0.0
        %473 = vmatpush2.msra.mxu0 0.0
        %474 = vmatprep.subr.mxu0 0.0
        %475 = vmatpush2.msra.mxu0 0.0
        %476 = vmatprep.subr.mxu0 0.0
        %477 = vmatpush2.msra.mxu0 0.0
        %478 = vmatprep.subr.mxu0 0.0
        %479 = vmatpush2.msra.mxu0 0.0
        %480 = vmatprep.subr.mxu0 0.0
        %481 = vmatpush2.msra.mxu0 0.0
        %482 = vmatprep.subr.mxu0 0.0
        %483 = vmatpush2.msra.mxu0 0.0
        %484 = vmatprep.mubr.f32.mxu0 0.0
        %485 = vmatmul.mubr.f32.gmra.mxu0 %v415
        %v486 = vpop.f32.mrf.mxu0
        %v487 = vadd.f32 %v233, %v486
        %v488 = vpop.f32.mrf.mxu0
        %489 = vmatprep.mubr.f32.mxu0 0.0
        %490 = vmatmul.mubr.f32.gmra.mxu0 %v418
        %v491 = vpop.f32.mrf.mxu0
        %v492 = vadd.f32 %v233, %v491
        %v493 = vpop.f32.mrf.mxu0
        %494 = vdwg.mxu0
        %495 = vst.msk [vmem:[#allocation2] sm:$0xff] %vm349, %v487
        %496 = vst.msk [vmem:[#allocation2 + $0x8] sm:$0xff] %vm349, %v492
        %v497 = vld [vmem:[#allocation2] ss:$4 sm:$0xf]
        %s498 = scalar_lea.vmem %s221, 4 [#allocation8]
        %499 = vst.msk [vmem:[%s498] sm:$0xf] %vm353, %v497
        %v500 = vld [vmem:[%s355] ss:$4 sm:$0xf]
        %502 = vrot.lane.b32.xlu0 %v500, 32
        %v503 = vpop.permute.xlu0 %502
        %505 = vst.msk [vmem:[%s498] sm:$0xf] %vm361, %v503
        %v506 = vld [vmem:[%s363] ss:$4 sm:$0xf]
        %508 = vrot.lane.b32.xlu0 %v506, 64
        %v509 = vpop.permute.xlu0 %508
        %511 = vst.msk [vmem:[%s498] sm:$0xf] %vm369, %v509
        %v512 = vld [vmem:[%s371] ss:$4 sm:$0xf]
        %514 = vrot.lane.b32.xlu0 %v512, 96
        %v515 = vpop.permute.xlu0 %514
        %517 = vst.msk [vmem:[%s498] sm:$0xf] %vm377, %v515
        %s518 = scalar_lea.vmem %s195, 32 [#allocation3]
        %v519 = vld [vmem:[%s518] sm:$0xff]
        %v520 = vld [vmem:[%s518 + $0x8] sm:$0xff]
        %521 = vxpose.xlu0.b32.start [1/16] %v519, 128
        %522 = vxpose.xlu0.b32.cont [2/16] %v520, 128
        %523 = vxpose.xlu0.b32.cont [3/16] 0.0, 128
        %524 = vxpose.xlu0.b32.cont [4/16] 0.0, 128
        %525 = vxpose.xlu0.b32.cont [5/16] 0.0, 128
        %526 = vxpose.xlu0.b32.cont [6/16] 0.0, 128
        %527 = vxpose.xlu0.b32.cont [7/16] 0.0, 128
        %528 = vxpose.xlu0.b32.cont [8/16] 0.0, 128
        %529 = vxpose.xlu0.b32.cont [9/16] 0.0, 128
        %530 = vxpose.xlu0.b32.cont [10/16] 0.0, 128
        %531 = vxpose.xlu0.b32.cont [11/16] 0.0, 128
        %532 = vxpose.xlu0.b32.cont [12/16] 0.0, 128
        %533 = vxpose.xlu0.b32.cont [13/16] 0.0, 128
        %534 = vxpose.xlu0.b32.cont [14/16] 0.0, 128
        %535 = vxpose.xlu0.b32.cont [15/16] 0.0, 128
        %536 = vxpose.xlu0.b32.end [16/16] 0.0, 128
        %v537 = vpop.trf.xlu0
        %v538 = vpop.trf.xlu0
        %v539 = vpop.trf.xlu0
        %v540 = vpop.trf.xlu0
        %v541 = vpop.trf.xlu0
        %v542 = vpop.trf.xlu0
        %v543 = vpop.trf.xlu0
        %v544 = vpop.trf.xlu0
        %v545 = vpop.trf.xlu0
        %v546 = vpop.trf.xlu0
        %v547 = vpop.trf.xlu0
        %v548 = vpop.trf.xlu0
        %v549 = vpop.trf.xlu0
        %v550 = vpop.trf.xlu0
        %v551 = vpop.trf.xlu0
        %v552 = vpop.trf.xlu0
        %v554 = vsel %vm267, %v537, 0
        %v557 = vsel %vm267, %v538, 0
        %559 = vmatprep.subr.mxu0 0.0
        %560 = vmatpush1.msra.mxu0 0.0
        %561 = vmatprep.subr.mxu0 0.0
        %562 = vmatpush1.msra.mxu0 0.0
        %563 = vmatprep.subr.mxu0 0.0
        %564 = vmatpush1.msra.mxu0 0.0
        %565 = vmatprep.subr.mxu0 0.0
        %566 = vmatpush1.msra.mxu0 0.0
        %567 = vmatprep.subr.mxu0 0.0
        %568 = vmatpush1.msra.mxu0 0.0
        %569 = vmatprep.subr.mxu0 0.0
        %570 = vmatpush1.msra.mxu0 0.0
        %571 = vmatprep.subr.mxu0 0.0
        %572 = vmatpush1.msra.mxu0 0.0
        %573 = vmatprep.subr.mxu0 0.0
        %574 = vmatpush1.msra.mxu0 0.0
        %575 = vmatprep.subr.mxu0 0.0
        %576 = vmatpush1.msra.mxu0 0.0
        %577 = vmatprep.subr.mxu0 0.0
        %578 = vmatpush1.msra.mxu0 0.0
        %579 = vmatprep.subr.mxu0 0.0
        %580 = vmatpush1.msra.mxu0 0.0
        %581 = vmatprep.subr.mxu0 0.0
        %582 = vmatpush1.msra.mxu0 0.0
        %583 = vmatprep.subr.mxu0 0.0
        %584 = vmatpush1.msra.mxu0 0.0
        %585 = vmatprep.subr.mxu0 0.0
        %586 = vmatpush1.msra.mxu0 0.0
        %587 = vmatprep.subr.mxu0 0.0
        %588 = vmatpush1.msra.mxu0 %v225
        %589 = vmatprep.subr.mxu0 0.0
        %590 = vmatpush1.msra.mxu0 %v224
        %591 = vmatprep.subr.mxu0 0.0
        %592 = vmatpush2.msra.mxu0 0.0
        %593 = vmatprep.subr.mxu0 0.0
        %594 = vmatpush2.msra.mxu0 0.0
        %595 = vmatprep.subr.mxu0 0.0
        %596 = vmatpush2.msra.mxu0 0.0
        %597 = vmatprep.subr.mxu0 0.0
        %598 = vmatpush2.msra.mxu0 0.0
        %599 = vmatprep.subr.mxu0 0.0
        %600 = vmatpush2.msra.mxu0 0.0
        %601 = vmatprep.subr.mxu0 0.0
        %602 = vmatpush2.msra.mxu0 0.0
        %603 = vmatprep.subr.mxu0 0.0
        %604 = vmatpush2.msra.mxu0 0.0
        %605 = vmatprep.subr.mxu0 0.0
        %606 = vmatpush2.msra.mxu0 0.0
        %607 = vmatprep.subr.mxu0 0.0
        %608 = vmatpush2.msra.mxu0 0.0
        %609 = vmatprep.subr.mxu0 0.0
        %610 = vmatpush2.msra.mxu0 0.0
        %611 = vmatprep.subr.mxu0 0.0
        %612 = vmatpush2.msra.mxu0 0.0
        %613 = vmatprep.subr.mxu0 0.0
        %614 = vmatpush2.msra.mxu0 0.0
        %615 = vmatprep.subr.mxu0 0.0
        %616 = vmatpush2.msra.mxu0 0.0
        %617 = vmatprep.subr.mxu0 0.0
        %618 = vmatpush2.msra.mxu0 0.0
        %619 = vmatprep.subr.mxu0 0.0
        %620 = vmatpush2.msra.mxu0 0.0
        %621 = vmatprep.subr.mxu0 0.0
        %622 = vmatpush2.msra.mxu0 0.0
        %623 = vmatprep.mubr.f32.mxu0 0.0
        %624 = vmatmul.mubr.f32.gmra.mxu0 %v554
        %v625 = vpop.f32.mrf.mxu0
        %v626 = vadd.f32 %v233, %v625
        %v627 = vpop.f32.mrf.mxu0
        %628 = vmatprep.mubr.f32.mxu0 0.0
        %629 = vmatmul.mubr.f32.gmra.mxu0 %v557
        %v630 = vpop.f32.mrf.mxu0
        %v631 = vadd.f32 %v233, %v630
        %v632 = vpop.f32.mrf.mxu0
        %633 = vdwg.mxu0
        %634 = vst.msk [vmem:[#allocation2] sm:$0xff] %vm349, %v626
        %635 = vst.msk [vmem:[#allocation2 + $0x8] sm:$0xff] %vm349, %v631
        %v636 = vld [vmem:[#allocation2] ss:$4 sm:$0xf]
        %s637 = scalar_lea.vmem %s221, 8 [#allocation8]
        %638 = vst.msk [vmem:[%s637] sm:$0xf] %vm353, %v636
        %v639 = vld [vmem:[%s355] ss:$4 sm:$0xf]
        %641 = vrot.lane.b32.xlu0 %v639, 32
        %v642 = vpop.permute.xlu0 %641
        %644 = vst.msk [vmem:[%s637] sm:$0xf] %vm361, %v642
        %v645 = vld [vmem:[%s363] ss:$4 sm:$0xf]
        %647 = vrot.lane.b32.xlu0 %v645, 64
        %v648 = vpop.permute.xlu0 %647
        %650 = vst.msk [vmem:[%s637] sm:$0xf] %vm369, %v648
        %v651 = vld [vmem:[%s371] ss:$4 sm:$0xf]
        %653 = vrot.lane.b32.xlu0 %v651, 96
        %v654 = vpop.permute.xlu0 %653
        %656 = vst.msk [vmem:[%s637] sm:$0xf] %vm377, %v654
        %s657 = scalar_lea.vmem %s195, 48 [#allocation3]
        %v658 = vld [vmem:[%s657] sm:$0xff]
        %v659 = vld [vmem:[%s657 + $0x8] sm:$0xff]
        %660 = vxpose.xlu0.b32.start [1/16] %v658, 128
        %661 = vxpose.xlu0.b32.cont [2/16] %v659, 128
        %662 = vxpose.xlu0.b32.cont [3/16] 0.0, 128
        %663 = vxpose.xlu0.b32.cont [4/16] 0.0, 128
        %664 = vxpose.xlu0.b32.cont [5/16] 0.0, 128
        %665 = vxpose.xlu0.b32.cont [6/16] 0.0, 128
        %666 = vxpose.xlu0.b32.cont [7/16] 0.0, 128
        %667 = vxpose.xlu0.b32.cont [8/16] 0.0, 128
        %668 = vxpose.xlu0.b32.cont [9/16] 0.0, 128
        %669 = vxpose.xlu0.b32.cont [10/16] 0.0, 128
        %670 = vxpose.xlu0.b32.cont [11/16] 0.0, 128
        %671 = vxpose.xlu0.b32.cont [12/16] 0.0, 128
        %672 = vxpose.xlu0.b32.cont [13/16] 0.0, 128
        %673 = vxpose.xlu0.b32.cont [14/16] 0.0, 128
        %674 = vxpose.xlu0.b32.cont [15/16] 0.0, 128
        %675 = vxpose.xlu0.b32.end [16/16] 0.0, 128
        %v676 = vpop.trf.xlu0
        %v677 = vpop.trf.xlu0
        %v678 = vpop.trf.xlu0
        %v679 = vpop.trf.xlu0
        %v680 = vpop.trf.xlu0
        %v681 = vpop.trf.xlu0
        %v682 = vpop.trf.xlu0
        %v683 = vpop.trf.xlu0
        %v684 = vpop.trf.xlu0
        %v685 = vpop.trf.xlu0
        %v686 = vpop.trf.xlu0
        %v687 = vpop.trf.xlu0
        %v688 = vpop.trf.xlu0
        %v689 = vpop.trf.xlu0
        %v690 = vpop.trf.xlu0
        %v691 = vpop.trf.xlu0
        %v693 = vsel %vm267, %v676, 0
        %v696 = vsel %vm267, %v677, 0
        %698 = vmatprep.subr.mxu0 0.0
        %699 = vmatpush1.msra.mxu0 0.0
        %700 = vmatprep.subr.mxu0 0.0
        %701 = vmatpush1.msra.mxu0 0.0
        %702 = vmatprep.subr.mxu0 0.0
        %703 = vmatpush1.msra.mxu0 0.0
        %704 = vmatprep.subr.mxu0 0.0
        %705 = vmatpush1.msra.mxu0 0.0
        %706 = vmatprep.subr.mxu0 0.0
        %707 = vmatpush1.msra.mxu0 0.0
        %708 = vmatprep.subr.mxu0 0.0
        %709 = vmatpush1.msra.mxu0 0.0
        %710 = vmatprep.subr.mxu0 0.0
        %711 = vmatpush1.msra.mxu0 0.0
        %712 = vmatprep.subr.mxu0 0.0
        %713 = vmatpush1.msra.mxu0 0.0
        %714 = vmatprep.subr.mxu0 0.0
        %715 = vmatpush1.msra.mxu0 0.0
        %716 = vmatprep.subr.mxu0 0.0
        %717 = vmatpush1.msra.mxu0 0.0
        %718 = vmatprep.subr.mxu0 0.0
        %719 = vmatpush1.msra.mxu0 0.0
        %720 = vmatprep.subr.mxu0 0.0
        %721 = vmatpush1.msra.mxu0 0.0
        %722 = vmatprep.subr.mxu0 0.0
        %723 = vmatpush1.msra.mxu0 0.0
        %724 = vmatprep.subr.mxu0 0.0
        %725 = vmatpush1.msra.mxu0 0.0
        %726 = vmatprep.subr.mxu0 0.0
        %727 = vmatpush1.msra.mxu0 %v225
        %728 = vmatprep.subr.mxu0 0.0
        %729 = vmatpush1.msra.mxu0 %v224
        %730 = vmatprep.subr.mxu0 0.0
        %731 = vmatpush2.msra.mxu0 0.0
        %732 = vmatprep.subr.mxu0 0.0
        %733 = vmatpush2.msra.mxu0 0.0
        %734 = vmatprep.subr.mxu0 0.0
        %735 = vmatpush2.msra.mxu0 0.0
        %736 = vmatprep.subr.mxu0 0.0
        %737 = vmatpush2.msra.mxu0 0.0
        %738 = vmatprep.subr.mxu0 0.0
        %739 = vmatpush2.msra.mxu0 0.0
        %740 = vmatprep.subr.mxu0 0.0
        %741 = vmatpush2.msra.mxu0 0.0
        %742 = vmatprep.subr.mxu0 0.0
        %743 = vmatpush2.msra.mxu0 0.0
        %744 = vmatprep.subr.mxu0 0.0
        %745 = vmatpush2.msra.mxu0 0.0
        %746 = vmatprep.subr.mxu0 0.0
        %747 = vmatpush2.msra.mxu0 0.0
        %748 = vmatprep.subr.mxu0 0.0
        %749 = vmatpush2.msra.mxu0 0.0
        %750 = vmatprep.subr.mxu0 0.0
        %751 = vmatpush2.msra.mxu0 0.0
        %752 = vmatprep.subr.mxu0 0.0
        %753 = vmatpush2.msra.mxu0 0.0
        %754 = vmatprep.subr.mxu0 0.0
        %755 = vmatpush2.msra.mxu0 0.0
        %756 = vmatprep.subr.mxu0 0.0
        %757 = vmatpush2.msra.mxu0 0.0
        %758 = vmatprep.subr.mxu0 0.0
        %759 = vmatpush2.msra.mxu0 0.0
        %760 = vmatprep.subr.mxu0 0.0
        %761 = vmatpush2.msra.mxu0 0.0
        %762 = vmatprep.mubr.f32.mxu0 0.0
        %763 = vmatmul.mubr.f32.gmra.mxu0 %v693
        %v764 = vpop.f32.mrf.mxu0
        %v765 = vadd.f32 %v233, %v764
        %v766 = vpop.f32.mrf.mxu0
        %767 = vmatprep.mubr.f32.mxu0 0.0
        %768 = vmatmul.mubr.f32.gmra.mxu0 %v696
        %v769 = vpop.f32.mrf.mxu0
        %v770 = vadd.f32 %v233, %v769
        %v771 = vpop.f32.mrf.mxu0
        %772 = vdwg.mxu0
        %773 = vst.msk [vmem:[#allocation2] sm:$0xff] %vm349, %v765
        %774 = vst.msk [vmem:[#allocation2 + $0x8] sm:$0xff] %vm349, %v770
        %v775 = vld [vmem:[#allocation2] ss:$4 sm:$0xf]
        %s776 = scalar_lea.vmem %s221, 12 [#allocation8]
        %777 = vst.msk [vmem:[%s776] sm:$0xf] %vm353, %v775
        %v778 = vld [vmem:[%s355] ss:$4 sm:$0xf]
        %780 = vrot.lane.b32.xlu0 %v778, 32
        %v781 = vpop.permute.xlu0 %780
        %783 = vst.msk [vmem:[%s776] sm:$0xf] %vm361, %v781
        %v784 = vld [vmem:[%s363] ss:$4 sm:$0xf]
        %786 = vrot.lane.b32.xlu0 %v784, 64
        %v787 = vpop.permute.xlu0 %786
        %789 = vst.msk [vmem:[%s776] sm:$0xf] %vm369, %v787
        %v790 = vld [vmem:[%s371] ss:$4 sm:$0xf]
        %792 = vrot.lane.b32.xlu0 %v790, 96
        %v793 = vpop.permute.xlu0 %792
        %795 = vst.msk [vmem:[%s776] sm:$0xf] %vm377, %v793
        %s796 = sand.u32 %s113, 1
        %s797 = scalar_lea.sflag [#allocation5], %s796
        %s798 = sand.u32 %s113, 1
        %s799 = smul.addr %s798, 16
        %s800 = scalar_lea.vmem [#allocation8], %s799
        // Predicated region
        $region41: #{tpu_custom_call.1} parent=31 // pred_check
          %p801 = pneg %p123
        $region42: #{tpu_custom_call.1} parent=31 // pred_check_branch
          %803 = sbr.rel (%p801) target = $region44
        $region43: #{tpu_custom_call.1} parent=31 // pred_region
          %s804 = smul.u32 4, %s25
          %s806 = ssub.s32 256, 256
          %807 = vsyncadd %s797, %s806
          %s808 = sadd.s32 %s26, %s804
          %s809 = smul.addr %s808, 64
          %s810 = scalar_lea.hbm %s3, %s809
          %s811 = sshll.u32 %s800, 4
          %s812 = int_to_ptr.vmem [resolvable:$true] %s811
          %817 = dma.vmem_to_hbm [thread:$0]  %s812, 256, %s810, %s797, 64, 64, 4
        $region44: #{tpu_custom_call.1} parent=31 // pred_fallthru
          _
      $region32: #{tpu_custom_call.1} parent=5 // pred_fallthru
        _
      %p818 = scmp.le.s32.totalorder 2, %s16
      // Predicated region
      $region45: #{tpu_custom_call.1} parent=5 // pred_check
        %p819 = pneg %p818
      $region46: #{tpu_custom_call.1} parent=5 // pred_check_branch
        %821 = sbr.rel (%p819) target = $region48
      $region47: #{tpu_custom_call.1} parent=5 // pred_region
        %s822 = ssub.s32 %s16, 2
        // Predicated region
        $region49: #{tpu_custom_call.1} parent=47 // pred_check
          %p823 = pneg %p129
        $region50: #{tpu_custom_call.1} parent=47 // pred_check_branch
          %825 = sbr.rel (%p823) target = $region52
        $region51: #{tpu_custom_call.1} parent=47 // pred_region
          %s826 = sand.u32 %s114, 1
          %s827 = scalar_lea.sflag [#allocation5], %s826
          %s828 = sand.u32 %s114, 1
          %s829 = smul.addr %s828, 16
          %s830 = scalar_lea.vmem [#allocation8], %s829
          %831 = dma.done %s827, 256
        $region52: #{tpu_custom_call.1} parent=47 // pred_fallthru
          _
      $region48: #{tpu_custom_call.1} parent=5 // pred_fallthru
        _
    $region6: #{tpu_custom_call.1} parent=1 // loop_footer
      %s20 = sadd.s32 1, %s16
    $region7: #{tpu_custom_call.1} parent=1 // loop_footer_branch
      %15 = sbr.rel target = $region3
    $region8: #{tpu_custom_call.1} parent=1 // loop_exit
      _
    %832 = vsyncpa [#allocation4], 1
    %s833 = scalar_lea.sflag [#allocation4], 1
    %834 = vsyncpa %s833, 1
    %835 = vsyncpa [#allocation7], 1
    %836 = vsyncpa [#allocation5], 1
    %s837 = scalar_lea.sflag [#allocation5], 1
    %838 = vsyncpa %s837, 1

// kernel: tpu_custom_call.1
$region0: #{tpu_custom_call.1}
  #allocation0 [shape = 'u32[]', space=smem, size = 0x4, offset = 0x4, fixed_abs, tag = 'smem constant byte address 0x4 - core index']
  #allocation1 [shape = 'u32[144,128]{1,0:T(1,128)}', space=vmem, size = 0x12000, scoped, tag = 'internal scratch']
  %s0 = inlined_call_operand.hbm [shape: f32[8,16,16], index: 0, kind: input, shape index: {}]
  %s1 = inlined_call_operand.hbm [shape: f32[16,32], index: 1, kind: input, shape index: {}]
  %s2 = inlined_call_operand.vmem [shape: f32[1,32], index: 2, kind: input, shape index: {}]
  %s3 = inlined_call_operand.hbm [shape: f32[8,16,32], index: 3, kind: output, shape index: {}]
  %s4 = sld [smem:[#allocation0]]
  $region53: #{tpu_custom_call.1} parent=0
    _
  %s6 = ssub.s32 1, %s4
  %s7 = scalar_select 0, %s6, %s4
  $region1: #{tpu_custom_call.1} parent=0
    #allocation2 [shape = 'u8[65536]{0}', space=vmem, size = 0x10000, scoped, tag = 'input window, operand 0']
    #allocation3 [shape = 's32[2]{0}', space=sflag, size = 0x8, scoped, tag = 'scoped memory for tpu_custom_call.1']
    #allocation4 [shape = 's32[2]{0}', space=sflag, size = 0x8, scoped, tag = 'scoped memory for tpu_custom_call.1']
    #allocation5 [shape = 'u8[8192]{0}', space=vmem, size = 0x2000, scoped, tag = 'input window, operand 1, single buffered']
    #allocation6 [shape = 's32[1]{0}', space=sflag, size = 0x4, scoped, tag = 'scoped memory for tpu_custom_call.1']
    #allocation7 [shape = 'u8[65536]{0}', space=vmem, size = 0x10000, scoped, tag = 'output window, operand 0']
    %8 = vsyncpa [#allocation3], 0
    %s9 = scalar_lea.sflag [#allocation3], 1
    %10 = vsyncpa %s9, 0
    %11 = vsyncpa [#allocation6], 0
    %12 = vsyncpa [#allocation4], 0
    %s13 = scalar_lea.sflag [#allocation4], 1
    %14 = vsyncpa %s13, 0
    loop: start=0, step=1, limit=4
    $region2: #{tpu_custom_call.1} parent=1 // loop_pre_header
      _
    $region3: #{tpu_custom_call.1} parent=1 // loop_header
      %s16 = sphi 0, %s20
      %p17 = scmp.ge.s32.totalorder %s16, 4
      %s23 = sphi 0, %s35
      %s24 = sphi 0, %s31
      %s25 = sphi 0, %s23
      %s26 = sphi 0, %s24
      %s27 = sphi 0, %s25
      %s28 = sphi 0, %s26
      %s40 = sphi 0, %s42
      %s43 = sphi 0, %s40
      %s44 = sphi 0, %s43
      %s60 = sphi 0, %s44
      %s64 = sphi 0, %s64
      %s66 = sphi 0, %s64
      %s67 = sphi 0, %s66
      %s81 = sphi 0, %s67
      %s85 = sphi 0, %s85
      %s87 = sphi 0, %s85
      %s88 = sphi 0, %s87
      %s102 = sphi 0, %s88
      %s110 = sphi 0, %s112
      %s113 = sphi 0, %s110
      %s114 = sphi 0, %s113
      %s130 = sphi 0, %s114
    $region4: #{tpu_custom_call.1} parent=1 // loop_header_branch
      %19 = sbr.rel (%p17) target = $region8
    $region5: #{tpu_custom_call.1} parent=1 // loop_body
      %s21 = ssub.s32 %s16, 1
      %s22 = ssub.s32 %s16, 2
      %s29 = sadd.s32 1, %s24
      %p30 = scmp.ge.s32.totalorder %s29, 1
      %s31 = scalar_select %p30, 0, %s29
      %s32 = sadd.s32 1, %s23
      %s33 = scalar_select %p30, %s32, %s23
      %p34 = scmp.ge.s32.totalorder %s33, 2
      %s35 = scalar_select %p34, 0, %s33
      %s36 = ssub.s32 %s23, %s35
      %s37 = ssub.s32 %s24, %s31
      %s38 = sor.u32 %s36, %s37
      %p39 = scmp.eq.s32.totalorder %s38, 0
      %s41 = sadd.s32 %s40, 1
      %s42 = scalar_select %p39, %s40, %s41
      %p45 = pneg %p39
      %p46 = scmp.eq.s32.totalorder %s16, 1
      %p47 = por %p45, %p46
      %p48 = scmp.ne.s32.totalorder %s40, %s43
      %p49 = scmp.eq.s32.totalorder %s16, 0
      %p50 = por %p48, %p49
      %p51 = scmp.ne.s32.totalorder %s40, %s43
      %p52 = scmp.eq.s32.totalorder %s21, 1
      %p53 = por %p51, %p52
      %p54 = scmp.ne.s32.totalorder %s43, %s44
      %p55 = scmp.eq.s32.totalorder %s21, 0
      %p56 = por %p54, %p55
      %p57 = scmp.ne.s32.totalorder %s43, %s44
      %p58 = scmp.eq.s32.totalorder %s22, 1
      %p59 = por %p57, %p58
      %p61 = scmp.ne.s32.totalorder %s44, %s60
      %p62 = scmp.eq.s32.totalorder %s22, 0
      %p63 = por %p61, %p62
      %s65 = sadd.s32 %s64, 1
      %p68 = scmp.eq.s32.totalorder %s16, 1
      %p69 = scmp.ne.s32.totalorder %s64, %s66
      %p70 = scmp.eq.s32.totalorder %s16, 0
      %p71 = por %p69, %p70
      %p72 = scmp.ne.s32.totalorder %s64, %s66
      %p73 = scmp.eq.s32.totalorder %s21, 1
      %p74 = por %p72, %p73
      %p75 = scmp.ne.s32.totalorder %s66, %s67
      %p76 = scmp.eq.s32.totalorder %s21, 0
      %p77 = por %p75, %p76
      %p78 = scmp.ne.s32.totalorder %s66, %s67
      %p79 = scmp.eq.s32.totalorder %s22, 1
      %p80 = por %p78, %p79
      %p82 = scmp.ne.s32.totalorder %s67, %s81
      %p83 = scmp.eq.s32.totalorder %s22, 0
      %p84 = por %p82, %p83
      %s86 = sadd.s32 %s85, 1
      %p89 = scmp.eq.s32.totalorder %s16, 1
      %p90 = scmp.ne.s32.totalorder %s85, %s87
      %p91 = scmp.eq.s32.totalorder %s16, 0
      %p92 = por %p90, %p91
      %p93 = scmp.ne.s32.totalorder %s85, %s87
      %p94 = scmp.eq.s32.totalorder %s21, 1
      %p95 = por %p93, %p94
      %p96 = scmp.ne.s32.totalorder %s87, %s88
      %p97 = scmp.eq.s32.totalorder %s21, 0
      %p98 = por %p96, %p97
      %p99 = scmp.ne.s32.totalorder %s87, %s88
      %p100 = scmp.eq.s32.totalorder %s22, 1
      %p101 = por %p99, %p100
      %p103 = scmp.ne.s32.totalorder %s88, %s102
      %p104 = scmp.eq.s32.totalorder %s22, 0
      %p105 = por %p103, %p104
      %s106 = ssub.s32 %s23, %s35
      %s107 = ssub.s32 %s24, %s31
      %s108 = sor.u32 %s106, %s107
      %p109 = scmp.eq.s32.totalorder %s108, 0
      %s111 = sadd.s32 %s110, 1
      %s112 = scalar_select %p109, %s110, %s111
      %p115 = pneg %p109
      %p116 = scmp.eq.s32.totalorder %s16, 1
      %p117 = por %p115, %p116
      %p118 = scmp.ne.s32.totalorder %s110, %s113
      %p119 = scmp.eq.s32.totalorder %s16, 0
      %p120 = por %p118, %p119
      %p121 = scmp.ne.s32.totalorder %s110, %s113
      %p122 = scmp.eq.s32.totalorder %s21, 1
      %p123 = por %p121, %p122
      %p124 = scmp.ne.s32.totalorder %s113, %s114
      %p125 = scmp.eq.s32.totalorder %s21, 0
      %p126 = por %p124, %p125
      %p127 = scmp.ne.s32.totalorder %s113, %s114
      %p128 = scmp.eq.s32.totalorder %s22, 1
      %p129 = por %p127, %p128
      %p131 = scmp.ne.s32.totalorder %s114, %s130
      %p132 = scmp.eq.s32.totalorder %s22, 0
      %p133 = por %p131, %p132
      %p134 = scmp.le.s32.totalorder 1, %s16
      %p135 = scmp.lt.s32.totalorder %s16, 3
      %p136 = pnand %p134, %p135
      %p137 = pneg %p136
      // Predicated region
      $region9: #{tpu_custom_call.1} parent=5 // pred_check
        _
      $region10: #{tpu_custom_call.1} parent=5 // pred_check_branch
        %139 = sbr.rel (%p136) target = $region12
      $region11: #{tpu_custom_call.1} parent=5 // pred_region
        %s140 = ssub.s32 %s16, 1
        // Predicated region
        $region13: #{tpu_custom_call.1} parent=11 // pred_check
          %p141 = pneg %p77
        $region14: #{tpu_custom_call.1} parent=11 // pred_check_branch
          %143 = sbr.rel (%p141) target = $region16
        $region15: #{tpu_custom_call.1} parent=11 // pred_region
          %s145 = ssub.s32 256, 256
          %146 = vsyncadd [#allocation6], %s145
          %s147 = sshll.u32 [#allocation5], 4
          %s148 = int_to_ptr.vmem [resolvable:$true] %s147
          %153 = dma.hbm_to_vmem [thread:$0]  %s1, 256, %s148, [#allocation6], 128, 128, 8
        $region16: #{tpu_custom_call.1} parent=11 // pred_fallthru
          _
        // Predicated region
        $region17: #{tpu_custom_call.1} parent=11 // pred_check
          %p154 = pneg %p98
        $region18: #{tpu_custom_call.1} parent=11 // pred_check_branch
          %156 = sbr.rel (%p154) target = $region20
        $region19: #{tpu_custom_call.1} parent=11 // pred_region
          _
        $region20: #{tpu_custom_call.1} parent=11 // pred_fallthru
          _
      $region12: #{tpu_custom_call.1} parent=5 // pred_fallthru
        _
      %p157 = scmp.lt.s32.totalorder %s16, 2
      // Predicated region
      $region21: #{tpu_custom_call.1} parent=5 // pred_check
        %p158 = pneg %p157
      $region22: #{tpu_custom_call.1} parent=5 // pred_check_branch
        %160 = sbr.rel (%p158) target = $region24
      $region23: #{tpu_custom_call.1} parent=5 // pred_region
        // Predicated region
        $region25: #{tpu_custom_call.1} parent=23 // pred_check
          %p161 = pneg %p50
        $region26: #{tpu_custom_call.1} parent=23 // pred_check_branch
          %163 = sbr.rel (%p161) target = $region28
        $region27: #{tpu_custom_call.1} parent=23 // pred_region
          %s164 = sand.u32 %s40, 1
          %s165 = scalar_lea.sflag [#allocation3], %s164
          %s166 = sand.u32 %s40, 1
          %s167 = smul.addr %s166, 64
          %s168 = scalar_lea.vmem [#allocation2], %s167
          %s169 = smul.u32 4, %s23
          %s171 = ssub.s32 1024, 1024
          %172 = vsyncadd %s165, %s171
          %s173 = smul.addr %s169, 2
          %s174 = sadd.s32 %s24, %s173
          %s175 = smul.addr %s174, 128
          %s176 = scalar_lea.hbm %s0, %s175
          %s177 = sshll.u32 %s168, 4
          %s178 = int_to_ptr.vmem [resolvable:$true] %s177
          %183 = dma.hbm_to_vmem [thread:$0]  %s176, 1024, %s178, %s165, 128, 128, 8
        $region28: #{tpu_custom_call.1} parent=23 // pred_fallthru
          _
      $region24: #{tpu_custom_call.1} parent=5 // pred_fallthru
        _
      %p184 = scmp.le.s32.totalorder 1, %s16
      %p185 = scmp.lt.s32.totalorder %s16, 3
      %p186 = pnand %p184, %p185
      %p187 = pneg %p186
      // Predicated region
      $region29: #{tpu_custom_call.1} parent=5 // pred_check
        _
      $region30: #{tpu_custom_call.1} parent=5 // pred_check_branch
        %189 = sbr.rel (%p186) target = $region32
      $region31: #{tpu_custom_call.1} parent=5 // pred_region
        %s190 = ssub.s32 %s16, 1
        %s191 = sand.u32 %s43, 1
        %s192 = scalar_lea.sflag [#allocation3], %s191
        %s193 = sand.u32 %s43, 1
        %s194 = smul.addr %s193, 64
        %s195 = scalar_lea.vmem [#allocation2], %s194
        // Predicated region
        $region33: #{tpu_custom_call.1} parent=31 // pred_check
          %p196 = pneg %p56
        $region34: #{tpu_custom_call.1} parent=31 // pred_check_branch
          %198 = sbr.rel (%p196) target = $region36
        $region35: #{tpu_custom_call.1} parent=31 // pred_region
          %199 = dma.done %s192, 1024
        $region36: #{tpu_custom_call.1} parent=31 // pred_fallthru
          _
        // Predicated region
        $region37: #{tpu_custom_call.1} parent=31 // pred_check
          %p200 = pneg %p77
        $region38: #{tpu_custom_call.1} parent=31 // pred_check_branch
          %202 = sbr.rel (%p200) target = $region40
        $region39: #{tpu_custom_call.1} parent=31 // pred_region
          %203 = dma.done [#allocation6], 256
        $region40: #{tpu_custom_call.1} parent=31 // pred_fallthru
          _
        %s204 = sand.u32 %s43, 1
        %s205 = scalar_lea.sflag [#allocation3], %s204
        %s206 = sand.u32 %s43, 1
        %s207 = smul.addr %s206, 64
        %s208 = scalar_lea.vmem [#allocation2], %s207
        %p209 = pneg %p56
        %p210 = pneg %p53
        %p211 = pneg %p77
        %p212 = pneg %p74
        %p213 = pneg %p98
        %p214 = pneg %p95
        %p215 = pneg %p126
        %p216 = pneg %p123
        %s217 = sand.u32 %s113, 1
        %s218 = scalar_lea.sflag [#allocation4], %s217
        %s219 = sand.u32 %s113, 1
        %s220 = smul.addr %s219, 64
        %s221 = scalar_lea.vmem [#allocation7], %s220
        %s222 = smul.u32 4, %s25
        %s223 = smul.u32 4, %s25
        %s224 = smul.u32 2, %s26
        %v225 = vld [vmem:[#allocation5] sm:$0xff]
        %v226 = vld [vmem:[#allocation5 + $0x8] sm:$0xff]
        %v227 = vld [vmem:[%s2] sm:$0x1]
        %v228 = vld [vmem:[%s195] sm:$0xff]
        %v229 = vld [vmem:[%s195 + $0x8] sm:$0xff]
        %v231 = vlaneseq
        %v232 = vshrl.u32 %v231, 7
        %v233 = vsub.s32 0, %v232
        %v234 = vrot.slane %v227, %v233
        %236 = vxpose.xlu0.b32.start [1/16] %v228, 128
        %237 = vxpose.xlu0.b32.cont [2/16] %v229, 128
        %238 = vxpose.xlu0.b32.cont [3/16] 0.0, 128
        %239 = vxpose.xlu0.b32.cont [4/16] 0.0, 128
        %240 = vxpose.xlu0.b32.cont [5/16] 0.0, 128
        %241 = vxpose.xlu0.b32.cont [6/16] 0.0, 128
        %242 = vxpose.xlu0.b32.cont [7/16] 0.0, 128
        %243 = vxpose.xlu0.b32.cont [8/16] 0.0, 128
        %244 = vxpose.xlu0.b32.cont [9/16] 0.0, 128
        %245 = vxpose.xlu0.b32.cont [10/16] 0.0, 128
        %246 = vxpose.xlu0.b32.cont [11/16] 0.0, 128
        %247 = vxpose.xlu0.b32.cont [12/16] 0.0, 128
        %248 = vxpose.xlu0.b32.cont [13/16] 0.0, 128
        %249 = vxpose.xlu0.b32.cont [14/16] 0.0, 128
        %250 = vxpose.xlu0.b32.cont [15/16] 0.0, 128
        %251 = vxpose.xlu0.b32.end [16/16] 0.0, 128
        %v252 = vpop.trf.xlu0
        %v253 = vpop.trf.xlu0
        %v254 = vpop.trf.xlu0
        %v255 = vpop.trf.xlu0
        %v256 = vpop.trf.xlu0
        %v257 = vpop.trf.xlu0
        %v258 = vpop.trf.xlu0
        %v259 = vpop.trf.xlu0
        %v260 = vpop.trf.xlu0
        %v261 = vpop.trf.xlu0
        %v262 = vpop.trf.xlu0
        %v263 = vpop.trf.xlu0
        %v264 = vpop.trf.xlu0
        %v265 = vpop.trf.xlu0
        %v266 = vpop.trf.xlu0
        %v267 = vpop.trf.xlu0
        %vm268 = vcmask 130048
        %v270 = vsel %vm268, %v252, 0
        %v273 = vsel %vm268, %v253, 0
        %275 = vmatprep.subr.mxu0 0.0
        %276 = vmatpush1.msra.mxu0 0.0
        %277 = vmatprep.subr.mxu0 0.0
        %278 = vmatpush1.msra.mxu0 0.0
        %279 = vmatprep.subr.mxu0 0.0
        %280 = vmatpush1.msra.mxu0 0.0
        %281 = vmatprep.subr.mxu0 0.0
        %282 = vmatpush1.msra.mxu0 0.0
        %283 = vmatprep.subr.mxu0 0.0
        %284 = vmatpush1.msra.mxu0 0.0
        %285 = vmatprep.subr.mxu0 0.0
        %286 = vmatpush1.msra.mxu0 0.0
        %287 = vmatprep.subr.mxu0 0.0
        %288 = vmatpush1.msra.mxu0 0.0
        %289 = vmatprep.subr.mxu0 0.0
        %290 = vmatpush1.msra.mxu0 0.0
        %291 = vmatprep.subr.mxu0 0.0
        %292 = vmatpush1.msra.mxu0 0.0
        %293 = vmatprep.subr.mxu0 0.0
        %294 = vmatpush1.msra.mxu0 0.0
        %295 = vmatprep.subr.mxu0 0.0
        %296 = vmatpush1.msra.mxu0 0.0
        %297 = vmatprep.subr.mxu0 0.0
        %298 = vmatpush1.msra.mxu0 0.0
        %299 = vmatprep.subr.mxu0 0.0
        %300 = vmatpush1.msra.mxu0 0.0
        %301 = vmatprep.subr.mxu0 0.0
        %302 = vmatpush1.msra.mxu0 0.0
        %303 = vmatprep.subr.mxu0 0.0
        %304 = vmatpush1.msra.mxu0 %v226
        %305 = vmatprep.subr.mxu0 0.0
        %306 = vmatpush1.msra.mxu0 %v225
        %307 = vmatprep.subr.mxu0 0.0
        %308 = vmatpush2.msra.mxu0 0.0
        %309 = vmatprep.subr.mxu0 0.0
        %310 = vmatpush2.msra.mxu0 0.0
        %311 = vmatprep.subr.mxu0 0.0
        %312 = vmatpush2.msra.mxu0 0.0
        %313 = vmatprep.subr.mxu0 0.0
        %314 = vmatpush2.msra.mxu0 0.0
        %315 = vmatprep.subr.mxu0 0.0
        %316 = vmatpush2.msra.mxu0 0.0
        %317 = vmatprep.subr.mxu0 0.0
        %318 = vmatpush2.msra.mxu0 0.0
        %319 = vmatprep.subr.mxu0 0.0
        %320 = vmatpush2.msra.mxu0 0.0
        %321 = vmatprep.subr.mxu0 0.0
        %322 = vmatpush2.msra.mxu0 0.0
        %323 = vmatprep.subr.mxu0 0.0
        %324 = vmatpush2.msra.mxu0 0.0
        %325 = vmatprep.subr.mxu0 0.0
        %326 = vmatpush2.msra.mxu0 0.0
        %327 = vmatprep.subr.mxu0 0.0
        %328 = vmatpush2.msra.mxu0 0.0
        %329 = vmatprep.subr.mxu0 0.0
        %330 = vmatpush2.msra.mxu0 0.0
        %331 = vmatprep.subr.mxu0 0.0
        %332 = vmatpush2.msra.mxu0 0.0
        %333 = vmatprep.subr.mxu0 0.0
        %334 = vmatpush2.msra.mxu0 0.0
        %335 = vmatprep.subr.mxu0 0.0
        %336 = vmatpush2.msra.mxu0 0.0
        %337 = vmatprep.subr.mxu0 0.0
        %338 = vmatpush2.msra.mxu0 0.0
        %339 = vmatprep.mubr.f32.mxu0 0.0
        %340 = vmatmul.mubr.f32.gmra.mxu0 %v270
        %v341 = vpop.f32.mrf.mxu0
        %v342 = vadd.f32 %v234, %v341
        %v343 = vpop.f32.mrf.mxu0
        %344 = vmatprep.mubr.f32.mxu0 0.0
        %345 = vmatmul.mubr.f32.gmra.mxu0 %v273
        %v346 = vpop.f32.mrf.mxu0
        %v347 = vadd.f32 %v234, %v346
        %v348 = vpop.f32.mrf.mxu0
        %349 = vdwg.mxu0
        %vm350 = vcmask 261120
        %351 = vst.msk [vmem:[%s221] sm:$0xff] %vm350, %v342
        %352 = vst.msk [vmem:[%s221 + $0x8] sm:$0xff] %vm350, %v347
        %s353 = scalar_lea.vmem %s195, 16 [#allocation2]
        %v354 = vld [vmem:[%s353] sm:$0xff]
        %v355 = vld [vmem:[%s353 + $0x8] sm:$0xff]
        %356 = vxpose.xlu0.b32.start [1/16] %v354, 128
        %357 = vxpose.xlu0.b32.cont [2/16] %v355, 128
        %358 = vxpose.xlu0.b32.cont [3/16] 0.0, 128
        %359 = vxpose.xlu0.b32.cont [4/16] 0.0, 128
        %360 = vxpose.xlu0.b32.cont [5/16] 0.0, 128
        %361 = vxpose.xlu0.b32.cont [6/16] 0.0, 128
        %362 = vxpose.xlu0.b32.cont [7/16] 0.0, 128
        %363 = vxpose.xlu0.b32.cont [8/16] 0.0, 128
        %364 = vxpose.xlu0.b32.cont [9/16] 0.0, 128
        %365 = vxpose.xlu0.b32.cont [10/16] 0.0, 128
        %366 = vxpose.xlu0.b32.cont [11/16] 0.0, 128
        %367 = vxpose.xlu0.b32.cont [12/16] 0.0, 128
        %368 = vxpose.xlu0.b32.cont [13/16] 0.0, 128
        %369 = vxpose.xlu0.b32.cont [14/16] 0.0, 128
        %370 = vxpose.xlu0.b32.cont [15/16] 0.0, 128
        %371 = vxpose.xlu0.b32.end [16/16] 0.0, 128
        %v372 = vpop.trf.xlu0
        %v373 = vpop.trf.xlu0
        %v374 = vpop.trf.xlu0
        %v375 = vpop.trf.xlu0
        %v376 = vpop.trf.xlu0
        %v377 = vpop.trf.xlu0
        %v378 = vpop.trf.xlu0
        %v379 = vpop.trf.xlu0
        %v380 = vpop.trf.xlu0
        %v381 = vpop.trf.xlu0
        %v382 = vpop.trf.xlu0
        %v383 = vpop.trf.xlu0
        %v384 = vpop.trf.xlu0
        %v385 = vpop.trf.xlu0
        %v386 = vpop.trf.xlu0
        %v387 = vpop.trf.xlu0
        %v389 = vsel %vm268, %v372, 0
        %v392 = vsel %vm268, %v373, 0
        %394 = vmatprep.subr.mxu0 0.0
        %395 = vmatpush1.msra.mxu0 0.0
        %396 = vmatprep.subr.mxu0 0.0
        %397 = vmatpush1.msra.mxu0 0.0
        %398 = vmatprep.subr.mxu0 0.0
        %399 = vmatpush1.msra.mxu0 0.0
        %400 = vmatprep.subr.mxu0 0.0
        %401 = vmatpush1.msra.mxu0 0.0
        %402 = vmatprep.subr.mxu0 0.0
        %403 = vmatpush1.msra.mxu0 0.0
        %404 = vmatprep.subr.mxu0 0.0
        %405 = vmatpush1.msra.mxu0 0.0
        %406 = vmatprep.subr.mxu0 0.0
        %407 = vmatpush1.msra.mxu0 0.0
        %408 = vmatprep.subr.mxu0 0.0
        %409 = vmatpush1.msra.mxu0 0.0
        %410 = vmatprep.subr.mxu0 0.0
        %411 = vmatpush1.msra.mxu0 0.0
        %412 = vmatprep.subr.mxu0 0.0
        %413 = vmatpush1.msra.mxu0 0.0
        %414 = vmatprep.subr.mxu0 0.0
        %415 = vmatpush1.msra.mxu0 0.0
        %416 = vmatprep.subr.mxu0 0.0
        %417 = vmatpush1.msra.mxu0 0.0
        %418 = vmatprep.subr.mxu0 0.0
        %419 = vmatpush1.msra.mxu0 0.0
        %420 = vmatprep.subr.mxu0 0.0
        %421 = vmatpush1.msra.mxu0 0.0
        %422 = vmatprep.subr.mxu0 0.0
        %423 = vmatpush1.msra.mxu0 %v226
        %424 = vmatprep.subr.mxu0 0.0
        %425 = vmatpush1.msra.mxu0 %v225
        %426 = vmatprep.subr.mxu0 0.0
        %427 = vmatpush2.msra.mxu0 0.0
        %428 = vmatprep.subr.mxu0 0.0
        %429 = vmatpush2.msra.mxu0 0.0
        %430 = vmatprep.subr.mxu0 0.0
        %431 = vmatpush2.msra.mxu0 0.0
        %432 = vmatprep.subr.mxu0 0.0
        %433 = vmatpush2.msra.mxu0 0.0
        %434 = vmatprep.subr.mxu0 0.0
        %435 = vmatpush2.msra.mxu0 0.0
        %436 = vmatprep.subr.mxu0 0.0
        %437 = vmatpush2.msra.mxu0 0.0
        %438 = vmatprep.subr.mxu0 0.0
        %439 = vmatpush2.msra.mxu0 0.0
        %440 = vmatprep.subr.mxu0 0.0
        %441 = vmatpush2.msra.mxu0 0.0
        %442 = vmatprep.subr.mxu0 0.0
        %443 = vmatpush2.msra.mxu0 0.0
        %444 = vmatprep.subr.mxu0 0.0
        %445 = vmatpush2.msra.mxu0 0.0
        %446 = vmatprep.subr.mxu0 0.0
        %447 = vmatpush2.msra.mxu0 0.0
        %448 = vmatprep.subr.mxu0 0.0
        %449 = vmatpush2.msra.mxu0 0.0
        %450 = vmatprep.subr.mxu0 0.0
        %451 = vmatpush2.msra.mxu0 0.0
        %452 = vmatprep.subr.mxu0 0.0
        %453 = vmatpush2.msra.mxu0 0.0
        %454 = vmatprep.subr.mxu0 0.0
        %455 = vmatpush2.msra.mxu0 0.0
        %456 = vmatprep.subr.mxu0 0.0
        %457 = vmatpush2.msra.mxu0 0.0
        %458 = vmatprep.mubr.f32.mxu0 0.0
        %459 = vmatmul.mubr.f32.gmra.mxu0 %v389
        %v460 = vpop.f32.mrf.mxu0
        %v461 = vadd.f32 %v234, %v460
        %v462 = vpop.f32.mrf.mxu0
        %463 = vmatprep.mubr.f32.mxu0 0.0
        %464 = vmatmul.mubr.f32.gmra.mxu0 %v392
        %v465 = vpop.f32.mrf.mxu0
        %v466 = vadd.f32 %v234, %v465
        %v467 = vpop.f32.mrf.mxu0
        %468 = vdwg.mxu0
        %s469 = scalar_lea.vmem %s221, 16 [#allocation7]
        %470 = vst.msk [vmem:[%s469] sm:$0xff] %vm350, %v461
        %471 = vst.msk [vmem:[%s469 + $0x8] sm:$0xff] %vm350, %v466
        %s472 = scalar_lea.vmem %s195, 32 [#allocation2]
        %v473 = vld [vmem:[%s472] sm:$0xff]
        %v474 = vld [vmem:[%s472 + $0x8] sm:$0xff]
        %475 = vxpose.xlu0.b32.start [1/16] %v473, 128
        %476 = vxpose.xlu0.b32.cont [2/16] %v474, 128
        %477 = vxpose.xlu0.b32.cont [3/16] 0.0, 128
        %478 = vxpose.xlu0.b32.cont [4/16] 0.0, 128
        %479 = vxpose.xlu0.b32.cont [5/16] 0.0, 128
        %480 = vxpose.xlu0.b32.cont [6/16] 0.0, 128
        %481 = vxpose.xlu0.b32.cont [7/16] 0.0, 128
        %482 = vxpose.xlu0.b32.cont [8/16] 0.0, 128
        %483 = vxpose.xlu0.b32.cont [9/16] 0.0, 128
        %484 = vxpose.xlu0.b32.cont [10/16] 0.0, 128
        %485 = vxpose.xlu0.b32.cont [11/16] 0.0, 128
        %486 = vxpose.xlu0.b32.cont [12/16] 0.0, 128
        %487 = vxpose.xlu0.b32.cont [13/16] 0.0, 128
        %488 = vxpose.xlu0.b32.cont [14/16] 0.0, 128
        %489 = vxpose.xlu0.b32.cont [15/16] 0.0, 128
        %490 = vxpose.xlu0.b32.end [16/16] 0.0, 128
        %v491 = vpop.trf.xlu0
        %v492 = vpop.trf.xlu0
        %v493 = vpop.trf.xlu0
        %v494 = vpop.trf.xlu0
        %v495 = vpop.trf.xlu0
        %v496 = vpop.trf.xlu0
        %v497 = vpop.trf.xlu0
        %v498 = vpop.trf.xlu0
        %v499 = vpop.trf.xlu0
        %v500 = vpop.trf.xlu0
        %v501 = vpop.trf.xlu0
        %v502 = vpop.trf.xlu0
        %v503 = vpop.trf.xlu0
        %v504 = vpop.trf.xlu0
        %v505 = vpop.trf.xlu0
        %v506 = vpop.trf.xlu0
        %v508 = vsel %vm268, %v491, 0
        %v511 = vsel %vm268, %v492, 0
        %513 = vmatprep.subr.mxu0 0.0
        %514 = vmatpush1.msra.mxu0 0.0
        %515 = vmatprep.subr.mxu0 0.0
        %516 = vmatpush1.msra.mxu0 0.0
        %517 = vmatprep.subr.mxu0 0.0
        %518 = vmatpush1.msra.mxu0 0.0
        %519 = vmatprep.subr.mxu0 0.0
        %520 = vmatpush1.msra.mxu0 0.0
        %521 = vmatprep.subr.mxu0 0.0
        %522 = vmatpush1.msra.mxu0 0.0
        %523 = vmatprep.subr.mxu0 0.0
        %524 = vmatpush1.msra.mxu0 0.0
        %525 = vmatprep.subr.mxu0 0.0
        %526 = vmatpush1.msra.mxu0 0.0
        %527 = vmatprep.subr.mxu0 0.0
        %528 = vmatpush1.msra.mxu0 0.0
        %529 = vmatprep.subr.mxu0 0.0
        %530 = vmatpush1.msra.mxu0 0.0
        %531 = vmatprep.subr.mxu0 0.0
        %532 = vmatpush1.msra.mxu0 0.0
        %533 = vmatprep.subr.mxu0 0.0
        %534 = vmatpush1.msra.mxu0 0.0
        %535 = vmatprep.subr.mxu0 0.0
        %536 = vmatpush1.msra.mxu0 0.0
        %537 = vmatprep.subr.mxu0 0.0
        %538 = vmatpush1.msra.mxu0 0.0
        %539 = vmatprep.subr.mxu0 0.0
        %540 = vmatpush1.msra.mxu0 0.0
        %541 = vmatprep.subr.mxu0 0.0
        %542 = vmatpush1.msra.mxu0 %v226
        %543 = vmatprep.subr.mxu0 0.0
        %544 = vmatpush1.msra.mxu0 %v225
        %545 = vmatprep.subr.mxu0 0.0
        %546 = vmatpush2.msra.mxu0 0.0
        %547 = vmatprep.subr.mxu0 0.0
        %548 = vmatpush2.msra.mxu0 0.0
        %549 = vmatprep.subr.mxu0 0.0
        %550 = vmatpush2.msra.mxu0 0.0
        %551 = vmatprep.subr.mxu0 0.0
        %552 = vmatpush2.msra.mxu0 0.0
        %553 = vmatprep.subr.mxu0 0.0
        %554 = vmatpush2.msra.mxu0 0.0
        %555 = vmatprep.subr.mxu0 0.0
        %556 = vmatpush2.msra.mxu0 0.0
        %557 = vmatprep.subr.mxu0 0.0
        %558 = vmatpush2.msra.mxu0 0.0
        %559 = vmatprep.subr.mxu0 0.0
        %560 = vmatpush2.msra.mxu0 0.0
        %561 = vmatprep.subr.mxu0 0.0
        %562 = vmatpush2.msra.mxu0 0.0
        %563 = vmatprep.subr.mxu0 0.0
        %564 = vmatpush2.msra.mxu0 0.0
        %565 = vmatprep.subr.mxu0 0.0
        %566 = vmatpush2.msra.mxu0 0.0
        %567 = vmatprep.subr.mxu0 0.0
        %568 = vmatpush2.msra.mxu0 0.0
        %569 = vmatprep.subr.mxu0 0.0
        %570 = vmatpush2.msra.mxu0 0.0
        %571 = vmatprep.subr.mxu0 0.0
        %572 = vmatpush2.msra.mxu0 0.0
        %573 = vmatprep.subr.mxu0 0.0
        %574 = vmatpush2.msra.mxu0 0.0
        %575 = vmatprep.subr.mxu0 0.0
        %576 = vmatpush2.msra.mxu0 0.0
        %577 = vmatprep.mubr.f32.mxu0 0.0
        %578 = vmatmul.mubr.f32.gmra.mxu0 %v508
        %v579 = vpop.f32.mrf.mxu0
        %v580 = vadd.f32 %v234, %v579
        %v581 = vpop.f32.mrf.mxu0
        %582 = vmatprep.mubr.f32.mxu0 0.0
        %583 = vmatmul.mubr.f32.gmra.mxu0 %v511
        %v584 = vpop.f32.mrf.mxu0
        %v585 = vadd.f32 %v234, %v584
        %v586 = vpop.f32.mrf.mxu0
        %587 = vdwg.mxu0
        %s588 = scalar_lea.vmem %s221, 32 [#allocation7]
        %589 = vst.msk [vmem:[%s588] sm:$0xff] %vm350, %v580
        %590 = vst.msk [vmem:[%s588 + $0x8] sm:$0xff] %vm350, %v585
        %s591 = scalar_lea.vmem %s195, 48 [#allocation2]
        %v592 = vld [vmem:[%s591] sm:$0xff]
        %v593 = vld [vmem:[%s591 + $0x8] sm:$0xff]
        %594 = vxpose.xlu0.b32.start [1/16] %v592, 128
        %595 = vxpose.xlu0.b32.cont [2/16] %v593, 128
        %596 = vxpose.xlu0.b32.cont [3/16] 0.0, 128
        %597 = vxpose.xlu0.b32.cont [4/16] 0.0, 128
        %598 = vxpose.xlu0.b32.cont [5/16] 0.0, 128
        %599 = vxpose.xlu0.b32.cont [6/16] 0.0, 128
        %600 = vxpose.xlu0.b32.cont [7/16] 0.0, 128
        %601 = vxpose.xlu0.b32.cont [8/16] 0.0, 128
        %602 = vxpose.xlu0.b32.cont [9/16] 0.0, 128
        %603 = vxpose.xlu0.b32.cont [10/16] 0.0, 128
        %604 = vxpose.xlu0.b32.cont [11/16] 0.0, 128
        %605 = vxpose.xlu0.b32.cont [12/16] 0.0, 128
        %606 = vxpose.xlu0.b32.cont [13/16] 0.0, 128
        %607 = vxpose.xlu0.b32.cont [14/16] 0.0, 128
        %608 = vxpose.xlu0.b32.cont [15/16] 0.0, 128
        %609 = vxpose.xlu0.b32.end [16/16] 0.0, 128
        %v610 = vpop.trf.xlu0
        %v611 = vpop.trf.xlu0
        %v612 = vpop.trf.xlu0
        %v613 = vpop.trf.xlu0
        %v614 = vpop.trf.xlu0
        %v615 = vpop.trf.xlu0
        %v616 = vpop.trf.xlu0
        %v617 = vpop.trf.xlu0
        %v618 = vpop.trf.xlu0
        %v619 = vpop.trf.xlu0
        %v620 = vpop.trf.xlu0
        %v621 = vpop.trf.xlu0
        %v622 = vpop.trf.xlu0
        %v623 = vpop.trf.xlu0
        %v624 = vpop.trf.xlu0
        %v625 = vpop.trf.xlu0
        %v627 = vsel %vm268, %v610, 0
        %v630 = vsel %vm268, %v611, 0
        %632 = vmatprep.subr.mxu0 0.0
        %633 = vmatpush1.msra.mxu0 0.0
        %634 = vmatprep.subr.mxu0 0.0
        %635 = vmatpush1.msra.mxu0 0.0
        %636 = vmatprep.subr.mxu0 0.0
        %637 = vmatpush1.msra.mxu0 0.0
        %638 = vmatprep.subr.mxu0 0.0
        %639 = vmatpush1.msra.mxu0 0.0
        %640 = vmatprep.subr.mxu0 0.0
        %641 = vmatpush1.msra.mxu0 0.0
        %642 = vmatprep.subr.mxu0 0.0
        %643 = vmatpush1.msra.mxu0 0.0
        %644 = vmatprep.subr.mxu0 0.0
        %645 = vmatpush1.msra.mxu0 0.0
        %646 = vmatprep.subr.mxu0 0.0
        %647 = vmatpush1.msra.mxu0 0.0
        %648 = vmatprep.subr.mxu0 0.0
        %649 = vmatpush1.msra.mxu0 0.0
        %650 = vmatprep.subr.mxu0 0.0
        %651 = vmatpush1.msra.mxu0 0.0
        %652 = vmatprep.subr.mxu0 0.0
        %653 = vmatpush1.msra.mxu0 0.0
        %654 = vmatprep.subr.mxu0 0.0
        %655 = vmatpush1.msra.mxu0 0.0
        %656 = vmatprep.subr.mxu0 0.0
        %657 = vmatpush1.msra.mxu0 0.0
        %658 = vmatprep.subr.mxu0 0.0
        %659 = vmatpush1.msra.mxu0 0.0
        %660 = vmatprep.subr.mxu0 0.0
        %661 = vmatpush1.msra.mxu0 %v226
        %662 = vmatprep.subr.mxu0 0.0
        %663 = vmatpush1.msra.mxu0 %v225
        %664 = vmatprep.subr.mxu0 0.0
        %665 = vmatpush2.msra.mxu0 0.0
        %666 = vmatprep.subr.mxu0 0.0
        %667 = vmatpush2.msra.mxu0 0.0
        %668 = vmatprep.subr.mxu0 0.0
        %669 = vmatpush2.msra.mxu0 0.0
        %670 = vmatprep.subr.mxu0 0.0
        %671 = vmatpush2.msra.mxu0 0.0
        %672 = vmatprep.subr.mxu0 0.0
        %673 = vmatpush2.msra.mxu0 0.0
        %674 = vmatprep.subr.mxu0 0.0
        %675 = vmatpush2.msra.mxu0 0.0
        %676 = vmatprep.subr.mxu0 0.0
        %677 = vmatpush2.msra.mxu0 0.0
        %678 = vmatprep.subr.mxu0 0.0
        %679 = vmatpush2.msra.mxu0 0.0
        %680 = vmatprep.subr.mxu0 0.0
        %681 = vmatpush2.msra.mxu0 0.0
        %682 = vmatprep.subr.mxu0 0.0
        %683 = vmatpush2.msra.mxu0 0.0
        %684 = vmatprep.subr.mxu0 0.0
        %685 = vmatpush2.msra.mxu0 0.0
        %686 = vmatprep.subr.mxu0 0.0
        %687 = vmatpush2.msra.mxu0 0.0
        %688 = vmatprep.subr.mxu0 0.0
        %689 = vmatpush2.msra.mxu0 0.0
        %690 = vmatprep.subr.mxu0 0.0
        %691 = vmatpush2.msra.mxu0 0.0
        %692 = vmatprep.subr.mxu0 0.0
        %693 = vmatpush2.msra.mxu0 0.0
        %694 = vmatprep.subr.mxu0 0.0
        %695 = vmatpush2.msra.mxu0 0.0
        %696 = vmatprep.mubr.f32.mxu0 0.0
        %697 = vmatmul.mubr.f32.gmra.mxu0 %v627
        %v698 = vpop.f32.mrf.mxu0
        %v699 = vadd.f32 %v234, %v698
        %v700 = vpop.f32.mrf.mxu0
        %701 = vmatprep.mubr.f32.mxu0 0.0
        %702 = vmatmul.mubr.f32.gmra.mxu0 %v630
        %v703 = vpop.f32.mrf.mxu0
        %v704 = vadd.f32 %v234, %v703
        %v705 = vpop.f32.mrf.mxu0
        %706 = vdwg.mxu0
        %s707 = scalar_lea.vmem %s221, 48 [#allocation7]
        %708 = vst.msk [vmem:[%s707] sm:$0xff] %vm350, %v699
        %709 = vst.msk [vmem:[%s707 + $0x8] sm:$0xff] %vm350, %v704
        %s710 = sand.u32 %s113, 1
        %s711 = scalar_lea.sflag [#allocation4], %s710
        %s712 = sand.u32 %s113, 1
        %s713 = smul.addr %s712, 64
        %s714 = scalar_lea.vmem [#allocation7], %s713
        // Predicated region
        $region41: #{tpu_custom_call.1} parent=31 // pred_check
          %p715 = pneg %p123
        $region42: #{tpu_custom_call.1} parent=31 // pred_check_branch
          %717 = sbr.rel (%p715) target = $region44
        $region43: #{tpu_custom_call.1} parent=31 // pred_region
          %s718 = smul.u32 4, %s25
          %s719 = smul.u32 2, %s26
          %s721 = ssub.s32 1024, 1024
          %722 = vsyncadd %s711, %s721
          %s723 = smul.addr %s718, 2
          %s724 = sadd.s32 %s719, %s723
          %s725 = smul.addr %s724, 128
          %s726 = scalar_lea.hbm %s3, %s725
          %s727 = sshll.u32 %s714, 4
          %s728 = int_to_ptr.vmem [resolvable:$true] %s727
          %733 = dma.vmem_to_hbm [thread:$0]  %s728, 1024, %s726, %s711, 128, 128, 8
        $region44: #{tpu_custom_call.1} parent=31 // pred_fallthru
          _
      $region32: #{tpu_custom_call.1} parent=5 // pred_fallthru
        _
      %p734 = scmp.le.s32.totalorder 2, %s16
      // Predicated region
      $region45: #{tpu_custom_call.1} parent=5 // pred_check
        %p735 = pneg %p734
      $region46: #{tpu_custom_call.1} parent=5 // pred_check_branch
        %737 = sbr.rel (%p735) target = $region48
      $region47: #{tpu_custom_call.1} parent=5 // pred_region
        %s738 = ssub.s32 %s16, 2
        // Predicated region
        $region49: #{tpu_custom_call.1} parent=47 // pred_check
          %p739 = pneg %p129
        $region50: #{tpu_custom_call.1} parent=47 // pred_check_branch
          %741 = sbr.rel (%p739) target = $region52
        $region51: #{tpu_custom_call.1} parent=47 // pred_region
          %s742 = sand.u32 %s114, 1
          %s743 = scalar_lea.sflag [#allocation4], %s742
          %s744 = sand.u32 %s114, 1
          %s745 = smul.addr %s744, 64
          %s746 = scalar_lea.vmem [#allocation7], %s745
          %747 = dma.done %s743, 1024
        $region52: #{tpu_custom_call.1} parent=47 // pred_fallthru
          _
      $region48: #{tpu_custom_call.1} parent=5 // pred_fallthru
        _
    $region6: #{tpu_custom_call.1} parent=1 // loop_footer
      %s20 = sadd.s32 1, %s16
    $region7: #{tpu_custom_call.1} parent=1 // loop_footer_branch
      %15 = sbr.rel target = $region3
    $region8: #{tpu_custom_call.1} parent=1 // loop_exit
      _
    %748 = vsyncpa [#allocation3], 1
    %s749 = scalar_lea.sflag [#allocation3], 1
    %750 = vsyncpa %s749, 1
    %751 = vsyncpa [#allocation6], 1
    %752 = vsyncpa [#allocation4], 1
    %s753 = scalar_lea.sflag [#allocation4], 1
    %754 = vsyncpa %s753, 1

</llo_original>
